<compile_context>
chip_gen: v5e
topology: v5e:2x2
jax: 0.10.0
libtpu: 0.0.40
codegen_flags: <defaults>
</compile_context>

<pallas_src>
import jax
import jax.numpy as jnp
from jax import lax
from jax.experimental import pallas as pl
from jax.experimental.pallas import tpu as pltpu


# Union of the tap positions (dh, dw) of the three branches inside the 5x5
# padded window: (1,5) conv -> row dh=2, (5,1) conv -> col dw=2, (3,3) conv ->
# the centre 3x3 block.  Overlapping taps simply add, so only 13 of the 19
# original taps remain after folding.
_TAPS = tuple(sorted(
    {(2, dw) for dw in range(5)}
    | {(dh, 2) for dh in range(5)}
    | {(dh, dw) for dh in range(1, 4) for dw in range(1, 4)}))  # 13 taps


def _ac_attention_kernel(scal_ref, x_ref, out_ref, xpad_s):
    # scal_ref : SMEM f32[C*25 + 1]  -- folded 5x5 taps per channel + bias.
    # x_ref    : (bt, C, H, W) input block (original dtype).
    # out_ref  : (bt, C, H, W) output block.
    # xpad_s   : VMEM scratch (C, H+4, W+4), x.dtype -- in-kernel zero halo.
    bt, C, H, W = x_ref.shape
    bias_idx = C * 25

    # Zero the halo once per grid step; the interior is fully overwritten for
    # every batch element below, so the borders stay zero.
    xpad_s[...] = jnp.zeros_like(xpad_s)

    for b in range(bt):
        xb = x_ref[b]                                # (C, H, W)
        xpad_s[:, 2:2 + H, 2:2 + W] = xb             # build 2-halo padded copy
        xpad = xpad_s[...]                           # (C, H+4, W+4)

        # Single accumulator; bias (already wf-weighted) as the init value.
        acc = jnp.full((H, W), scal_ref[bias_idx], jnp.float32)
        for c in range(C):
            xc = xpad[c].astype(jnp.float32)         # (H+4, W+4)
            base = c * 25
            for dh, dw in _TAPS:
                acc = acc + xc[dh:dh + H, dw:dw + W] * scal_ref[base + dh * 5 + dw]

        # Exact sigmoid in f32 (exp runs on the EUP slot).
        att = 1.0 / (1.0 + jnp.exp(-acc))

        out_ref[b] = (xb.astype(jnp.float32) * att[None, :, :]).astype(out_ref.dtype)


def ac_attention_pallas(x, params):
    w1, b1, w2, b2, w3, b3, wf = params
    B, C, H, W = x.shape

    # ---- host-side folding of conv_final + biases into the tap weights ----
    wf0 = wf[0, 0, 0, 0].astype(jnp.float32)
    wf1 = wf[0, 1, 0, 0].astype(jnp.float32)
    wf2 = wf[0, 2, 0, 0].astype(jnp.float32)
    w_eff = jnp.zeros((C, 5, 5), jnp.float32)
    w_eff = w_eff.at[:, 2, :].add(wf0 * w1.reshape(C, 5).astype(jnp.float32))
    w_eff = w_eff.at[:, :, 2].add(wf1 * w2.reshape(C, 5).astype(jnp.float32))
    w_eff = w_eff.at[:, 1:4, 1:4].add(wf2 * w3.reshape(C, 3, 3).astype(jnp.float32))
    bias_eff = (wf0 * b1[0] + wf1 * b2[0] + wf2 * b3[0]).astype(jnp.float32)
    scal = jnp.concatenate([w_eff.reshape(-1), bias_eff.reshape(1)])  # (C*25+1,)

    # ---- batch packing: several batch elements per grid step if tiny ----
    bytes_per_batch = C * H * W * x.dtype.itemsize
    bt = 1
    for cand in range(B, 0, -1):
        if B % cand == 0 and cand * bytes_per_batch <= (2 << 20):
            bt = cand
            break

    block_bytes = bt * C * H * W * x.dtype.itemsize
    scratch_bytes = C * (H + 4) * (W + 4) * x.dtype.itemsize
    vmem_limit = int(max(32 << 20, min(6 * block_bytes + scratch_bytes, 64 << 20)))

    return pl.pallas_call(
        _ac_attention_kernel,
        out_shape=jax.ShapeDtypeStruct((B, C, H, W), x.dtype),
        grid_spec=pltpu.PrefetchScalarGridSpec(
            num_scalar_prefetch=0,
            grid=(B // bt,),
            in_specs=[
                pl.BlockSpec(memory_space=pltpu.MemorySpace.SMEM),       # taps+bias
                pl.BlockSpec((bt, C, H, W), lambda i: (i, 0, 0, 0)),     # x
            ],
            out_specs=pl.BlockSpec((bt, C, H, W), lambda i: (i, 0, 0, 0)),
            scratch_shapes=[pltpu.VMEM((C, H + 4, W + 4), x.dtype)],
        ),
        compiler_params=pltpu.CompilerParams(
            dimension_semantics=("parallel",),
            vmem_limit_bytes=vmem_limit,
        ),
    )(scal, x)


def ac_attention_ref(x, params):
    """Pure-JAX reference mirroring the PyTorch forward (NCHW)."""
    w1, b1, w2, b2, w3, b3, wf = params
    dn = lax.conv_dimension_numbers(x.shape, w1.shape, ('NCHW', 'OIHW', 'NCHW'))
    o1 = lax.conv_general_dilated(x, w1, (1, 1), ((0, 0), (2, 2)),
                                  dimension_numbers=dn) + b1.reshape(1, 1, 1, 1)
    o2 = lax.conv_general_dilated(x, w2, (1, 1), ((2, 2), (0, 0)),
                                  dimension_numbers=dn) + b2.reshape(1, 1, 1, 1)
    o3 = lax.conv_general_dilated(x, w3, (1, 1), ((1, 1), (1, 1)),
                                  dimension_numbers=dn) + b3.reshape(1, 1, 1, 1)
    cat = jnp.concatenate([o1, o2, o3], axis=1)
    dn2 = lax.conv_dimension_numbers(cat.shape, wf.shape, ('NCHW', 'OIHW', 'NCHW'))
    att = jax.nn.sigmoid(
        lax.conv_general_dilated(cat, wf, (1, 1), ((0, 0), (0, 0)),
                                 dimension_numbers=dn2))
    return att * x


def init_params(key, in_channel):
    """Deterministic synthetic parameters matching the module's shapes."""
    ks = jax.random.split(key, 7)
    def u(k, shape, fan_in):
        bound = 1.0 / jnp.sqrt(float(fan_in))
        return jax.random.uniform(k, shape, jnp.float32, -bound, bound)
    w1 = u(ks[0], (1, in_channel, 1, 5), in_channel * 5)
    b1 = u(ks[1], (1,), in_channel * 5)
    w2 = u(ks[2], (1, in_channel, 5, 1), in_channel * 5)
    b2 = u(ks[3], (1,), in_channel * 5)
    w3 = u(ks[4], (1, in_channel, 3, 3), in_channel * 9)
    b3 = u(ks[5], (1,), in_channel * 9)
    wf = u(ks[6], (1, 3, 1, 1), 3)          # conv_final, bias=False
    return (w1, b1, w2, b2, w3, b3, wf)


if __name__ == "__main__":
    B, C, H, W = 2, 4, 16, 16
    key = jax.random.PRNGKey(0)
    kx, kp = jax.random.split(key)
    x = jax.random.normal(kx, (B, C, H, W), jnp.float32)
    params = init_params(kp, C)

    out = jax.block_until_ready(ac_attention_pallas(x, params))
    ref = jax.block_until_ready(ac_attention_ref(x, params))

    assert out.shape == (B, C, H, W), out.shape
    if not jnp.allclose(out, ref, atol=1e-4, rtol=1e-4):
        raise AssertionError("Pallas output does not match JAX reference")
    print("KERNEL_OK")
</pallas_src>

<mosaic_0001>
module attributes {stable_mosaic.version = 11 : i64} {
  func.func @_ac_attention_kernel(%arg0: i32, %arg1: memref<101xf32, #tpu.memory_space<smem>>, %arg2: memref<2x4x16x16xf32, #tpu.memory_space<vmem>>, %arg3: memref<2x4x16x16xf32, #tpu.memory_space<vmem>>, %arg4: memref<4x20x20xf32, #tpu.memory_space<vmem>>) attributes {dimension_semantics = [#tpu.dimension_semantics<parallel>], iteration_bounds = array<i64: 1>, scalar_prefetch = 0 : i64, scratch_operands = 1 : i64, tpu.core_type = #tpu.core_type<tc>, window_params = [{transform_indices = @transform_0, window_bounds = array<i64: 101>}, {transform_indices = @transform_1, window_bounds = array<i64: 2, 4, 16, 16>}, {transform_indices = @transform_2, window_bounds = array<i64: 2, 4, 16, 16>}]} {
    %cst = arith.constant 0.000000e+00 : f32
    %0 = vector.broadcast %cst : f32 to vector<4x20x20xf32>
    %c0 = arith.constant 0 : index
    %c0_0 = arith.constant 0 : index
    %c0_1 = arith.constant 0 : index
    %1 = vector.load %arg4[%c0, %c0_0, %c0_1] : memref<4x20x20xf32, #tpu.memory_space<vmem>>, vector<4x20x20xf32>
    tpu.vector_store %arg4[%c0, %c0_0, %c0_1], %0 {strides = array<i32>} : memref<4x20x20xf32, #tpu.memory_space<vmem>>, vector<4x20x20xf32>,
    %c0_2 = arith.constant 0 : index
    %c0_3 = arith.constant 0 : index
    %c0_4 = arith.constant 0 : index
    %c0_5 = arith.constant 0 : index
    %2 = vector.load %arg2[%c0_2, %c0_3, %c0_4, %c0_5] : memref<2x4x16x16xf32, #tpu.memory_space<vmem>>, vector<1x4x16x16xf32>
    %3 = vector.shape_cast %2 : vector<1x4x16x16xf32> to vector<4x16x16xf32>
    %c0_6 = arith.constant 0 : index
    %c2 = arith.constant 2 : index
    %c2_7 = arith.constant 2 : index
    %4 = vector.load %arg4[%c0_6, %c2, %c2_7] : memref<4x20x20xf32, #tpu.memory_space<vmem>>, vector<4x16x16xf32>
    tpu.vector_store %arg4[%c0_6, %c2, %c2_7], %3 {strides = array<i32>} : memref<4x20x20xf32, #tpu.memory_space<vmem>>, vector<4x16x16xf32>,
    %c0_8 = arith.constant 0 : index
    %c0_9 = arith.constant 0 : index
    %c0_10 = arith.constant 0 : index
    %5 = vector.load %arg4[%c0_8, %c0_9, %c0_10] : memref<4x20x20xf32, #tpu.memory_space<vmem>>, vector<4x20x20xf32>
    %c100 = arith.constant 100 : index
    %6 = memref.load %arg1[%c100] : memref<101xf32, #tpu.memory_space<smem>>
    %7 = vector.broadcast %6 : f32 to vector<16x16xf32>
    %8 = vector.extract_strided_slice %5 {offsets = [0, 0, 0], sizes = [1, 20, 20], strides = [1, 1, 1]} : vector<4x20x20xf32> to vector<1x20x20xf32>
    %9 = vector.shape_cast %8 : vector<1x20x20xf32> to vector<20x20xf32>
    %10 = vector.extract_strided_slice %9 {offsets = [0, 2], sizes = [16, 16], strides = [1, 1]} : vector<20x20xf32> to vector<16x16xf32>
    %c2_11 = arith.constant 2 : index
    %11 = memref.load %arg1[%c2_11] : memref<101xf32, #tpu.memory_space<smem>>
    %12 = vector.broadcast %11 : f32 to vector<16x16xf32>
    %13 = arith.mulf %10, %12 : vector<16x16xf32>
    %14 = arith.addf %7, %13 : vector<16x16xf32>
    %15 = vector.extract_strided_slice %9 {offsets = [1, 1], sizes = [16, 16], strides = [1, 1]} : vector<20x20xf32> to vector<16x16xf32>
    %c6 = arith.constant 6 : index
    %16 = memref.load %arg1[%c6] : memref<101xf32, #tpu.memory_space<smem>>
    %17 = vector.broadcast %16 : f32 to vector<16x16xf32>
    %18 = arith.mulf %15, %17 : vector<16x16xf32>
    %19 = arith.addf %14, %18 : vector<16x16xf32>
    %20 = vector.extract_strided_slice %9 {offsets = [1, 2], sizes = [16, 16], strides = [1, 1]} : vector<20x20xf32> to vector<16x16xf32>
    %c7 = arith.constant 7 : index
    %21 = memref.load %arg1[%c7] : memref<101xf32, #tpu.memory_space<smem>>
    %22 = vector.broadcast %21 : f32 to vector<16x16xf32>
    %23 = arith.mulf %20, %22 : vector<16x16xf32>
    %24 = arith.addf %19, %23 : vector<16x16xf32>
    %25 = vector.extract_strided_slice %9 {offsets = [1, 3], sizes = [16, 16], strides = [1, 1]} : vector<20x20xf32> to vector<16x16xf32>
    %c8 = arith.constant 8 : index
    %26 = memref.load %arg1[%c8] : memref<101xf32, #tpu.memory_space<smem>>
    %27 = vector.broadcast %26 : f32 to vector<16x16xf32>
    %28 = arith.mulf %25, %27 : vector<16x16xf32>
    %29 = arith.addf %24, %28 : vector<16x16xf32>
    %30 = vector.extract_strided_slice %9 {offsets = [2, 0], sizes = [16, 16], strides = [1, 1]} : vector<20x20xf32> to vector<16x16xf32>
    %c10 = arith.constant 10 : index
    %31 = memref.load %arg1[%c10] : memref<101xf32, #tpu.memory_space<smem>>
    %32 = vector.broadcast %31 : f32 to vector<16x16xf32>
    %33 = arith.mulf %30, %32 : vector<16x16xf32>
    %34 = arith.addf %29, %33 : vector<16x16xf32>
    %35 = vector.extract_strided_slice %9 {offsets = [2, 1], sizes = [16, 16], strides = [1, 1]} : vector<20x20xf32> to vector<16x16xf32>
    %c11 = arith.constant 11 : index
    %36 = memref.load %arg1[%c11] : memref<101xf32, #tpu.memory_space<smem>>
    %37 = vector.broadcast %36 : f32 to vector<16x16xf32>
    %38 = arith.mulf %35, %37 : vector<16x16xf32>
    %39 = arith.addf %34, %38 : vector<16x16xf32>
    %40 = vector.extract_strided_slice %9 {offsets = [2, 2], sizes = [16, 16], strides = [1, 1]} : vector<20x20xf32> to vector<16x16xf32>
    %c12 = arith.constant 12 : index
    %41 = memref.load %arg1[%c12] : memref<101xf32, #tpu.memory_space<smem>>
    %42 = vector.broadcast %41 : f32 to vector<16x16xf32>
    %43 = arith.mulf %40, %42 : vector<16x16xf32>
    %44 = arith.addf %39, %43 : vector<16x16xf32>
    %45 = vector.extract_strided_slice %9 {offsets = [2, 3], sizes = [16, 16], strides = [1, 1]} : vector<20x20xf32> to vector<16x16xf32>
    %c13 = arith.constant 13 : index
    %46 = memref.load %arg1[%c13] : memref<101xf32, #tpu.memory_space<smem>>
    %47 = vector.broadcast %46 : f32 to vector<16x16xf32>
    %48 = arith.mulf %45, %47 : vector<16x16xf32>
    %49 = arith.addf %44, %48 : vector<16x16xf32>
    %50 = vector.extract_strided_slice %9 {offsets = [2, 4], sizes = [16, 16], strides = [1, 1]} : vector<20x20xf32> to vector<16x16xf32>
    %c14 = arith.constant 14 : index
    %51 = memref.load %arg1[%c14] : memref<101xf32, #tpu.memory_space<smem>>
    %52 = vector.broadcast %51 : f32 to vector<16x16xf32>
    %53 = arith.mulf %50, %52 : vector<16x16xf32>
    %54 = arith.addf %49, %53 : vector<16x16xf32>
    %55 = vector.extract_strided_slice %9 {offsets = [3, 1], sizes = [16, 16], strides = [1, 1]} : vector<20x20xf32> to vector<16x16xf32>
    %c16 = arith.constant 16 : index
    %56 = memref.load %arg1[%c16] : memref<101xf32, #tpu.memory_space<smem>>
    %57 = vector.broadcast %56 : f32 to vector<16x16xf32>
    %58 = arith.mulf %55, %57 : vector<16x16xf32>
    %59 = arith.addf %54, %58 : vector<16x16xf32>
    %60 = vector.extract_strided_slice %9 {offsets = [3, 2], sizes = [16, 16], strides = [1, 1]} : vector<20x20xf32> to vector<16x16xf32>
    %c17 = arith.constant 17 : index
    %61 = memref.load %arg1[%c17] : memref<101xf32, #tpu.memory_space<smem>>
    %62 = vector.broadcast %61 : f32 to vector<16x16xf32>
    %63 = arith.mulf %60, %62 : vector<16x16xf32>
    %64 = arith.addf %59, %63 : vector<16x16xf32>
    %65 = vector.extract_strided_slice %9 {offsets = [3, 3], sizes = [16, 16], strides = [1, 1]} : vector<20x20xf32> to vector<16x16xf32>
    %c18 = arith.constant 18 : index
    %66 = memref.load %arg1[%c18] : memref<101xf32, #tpu.memory_space<smem>>
    %67 = vector.broadcast %66 : f32 to vector<16x16xf32>
    %68 = arith.mulf %65, %67 : vector<16x16xf32>
    %69 = arith.addf %64, %68 : vector<16x16xf32>
    %70 = vector.extract_strided_slice %9 {offsets = [4, 2], sizes = [16, 16], strides = [1, 1]} : vector<20x20xf32> to vector<16x16xf32>
    %c22 = arith.constant 22 : index
    %71 = memref.load %arg1[%c22] : memref<101xf32, #tpu.memory_space<smem>>
    %72 = vector.broadcast %71 : f32 to vector<16x16xf32>
    %73 = arith.mulf %70, %72 : vector<16x16xf32>
    %74 = arith.addf %69, %73 : vector<16x16xf32>
    %75 = vector.extract_strided_slice %5 {offsets = [1, 0, 0], sizes = [1, 20, 20], strides = [1, 1, 1]} : vector<4x20x20xf32> to vector<1x20x20xf32>
    %76 = vector.shape_cast %75 : vector<1x20x20xf32> to vector<20x20xf32>
    %77 = vector.extract_strided_slice %76 {offsets = [0, 2], sizes = [16, 16], strides = [1, 1]} : vector<20x20xf32> to vector<16x16xf32>
    %c27 = arith.constant 27 : index
    %78 = memref.load %arg1[%c27] : memref<101xf32, #tpu.memory_space<smem>>
    %79 = vector.broadcast %78 : f32 to vector<16x16xf32>
    %80 = arith.mulf %77, %79 : vector<16x16xf32>
    %81 = arith.addf %74, %80 : vector<16x16xf32>
    %82 = vector.extract_strided_slice %76 {offsets = [1, 1], sizes = [16, 16], strides = [1, 1]} : vector<20x20xf32> to vector<16x16xf32>
    %c31 = arith.constant 31 : index
    %83 = memref.load %arg1[%c31] : memref<101xf32, #tpu.memory_space<smem>>
    %84 = vector.broadcast %83 : f32 to vector<16x16xf32>
    %85 = arith.mulf %82, %84 : vector<16x16xf32>
    %86 = arith.addf %81, %85 : vector<16x16xf32>
    %87 = vector.extract_strided_slice %76 {offsets = [1, 2], sizes = [16, 16], strides = [1, 1]} : vector<20x20xf32> to vector<16x16xf32>
    %c32 = arith.constant 32 : index
    %88 = memref.load %arg1[%c32] : memref<101xf32, #tpu.memory_space<smem>>
    %89 = vector.broadcast %88 : f32 to vector<16x16xf32>
    %90 = arith.mulf %87, %89 : vector<16x16xf32>
    %91 = arith.addf %86, %90 : vector<16x16xf32>
    %92 = vector.extract_strided_slice %76 {offsets = [1, 3], sizes = [16, 16], strides = [1, 1]} : vector<20x20xf32> to vector<16x16xf32>
    %c33 = arith.constant 33 : index
    %93 = memref.load %arg1[%c33] : memref<101xf32, #tpu.memory_space<smem>>
    %94 = vector.broadcast %93 : f32 to vector<16x16xf32>
    %95 = arith.mulf %92, %94 : vector<16x16xf32>
    %96 = arith.addf %91, %95 : vector<16x16xf32>
    %97 = vector.extract_strided_slice %76 {offsets = [2, 0], sizes = [16, 16], strides = [1, 1]} : vector<20x20xf32> to vector<16x16xf32>
    %c35 = arith.constant 35 : index
    %98 = memref.load %arg1[%c35] : memref<101xf32, #tpu.memory_space<smem>>
    %99 = vector.broadcast %98 : f32 to vector<16x16xf32>
    %100 = arith.mulf %97, %99 : vector<16x16xf32>
    %101 = arith.addf %96, %100 : vector<16x16xf32>
    %102 = vector.extract_strided_slice %76 {offsets = [2, 1], sizes = [16, 16], strides = [1, 1]} : vector<20x20xf32> to vector<16x16xf32>
    %c36 = arith.constant 36 : index
    %103 = memref.load %arg1[%c36] : memref<101xf32, #tpu.memory_space<smem>>
    %104 = vector.broadcast %103 : f32 to vector<16x16xf32>
    %105 = arith.mulf %102, %104 : vector<16x16xf32>
    %106 = arith.addf %101, %105 : vector<16x16xf32>
    %107 = vector.extract_strided_slice %76 {offsets = [2, 2], sizes = [16, 16], strides = [1, 1]} : vector<20x20xf32> to vector<16x16xf32>
    %c37 = arith.constant 37 : index
    %108 = memref.load %arg1[%c37] : memref<101xf32, #tpu.memory_space<smem>>
    %109 = vector.broadcast %108 : f32 to vector<16x16xf32>
    %110 = arith.mulf %107, %109 : vector<16x16xf32>
    %111 = arith.addf %106, %110 : vector<16x16xf32>
    %112 = vector.extract_strided_slice %76 {offsets = [2, 3], sizes = [16, 16], strides = [1, 1]} : vector<20x20xf32> to vector<16x16xf32>
    %c38 = arith.constant 38 : index
    %113 = memref.load %arg1[%c38] : memref<101xf32, #tpu.memory_space<smem>>
    %114 = vector.broadcast %113 : f32 to vector<16x16xf32>
    %115 = arith.mulf %112, %114 : vector<16x16xf32>
    %116 = arith.addf %111, %115 : vector<16x16xf32>
    %117 = vector.extract_strided_slice %76 {offsets = [2, 4], sizes = [16, 16], strides = [1, 1]} : vector<20x20xf32> to vector<16x16xf32>
    %c39 = arith.constant 39 : index
    %118 = memref.load %arg1[%c39] : memref<101xf32, #tpu.memory_space<smem>>
    %119 = vector.broadcast %118 : f32 to vector<16x16xf32>
    %120 = arith.mulf %117, %119 : vector<16x16xf32>
    %121 = arith.addf %116, %120 : vector<16x16xf32>
    %122 = vector.extract_strided_slice %76 {offsets = [3, 1], sizes = [16, 16], strides = [1, 1]} : vector<20x20xf32> to vector<16x16xf32>
    %c41 = arith.constant 41 : index
    %123 = memref.load %arg1[%c41] : memref<101xf32, #tpu.memory_space<smem>>
    %124 = vector.broadcast %123 : f32 to vector<16x16xf32>
    %125 = arith.mulf %122, %124 : vector<16x16xf32>
    %126 = arith.addf %121, %125 : vector<16x16xf32>
    %127 = vector.extract_strided_slice %76 {offsets = [3, 2], sizes = [16, 16], strides = [1, 1]} : vector<20x20xf32> to vector<16x16xf32>
    %c42 = arith.constant 42 : index
    %128 = memref.load %arg1[%c42] : memref<101xf32, #tpu.memory_space<smem>>
    %129 = vector.broadcast %128 : f32 to vector<16x16xf32>
    %130 = arith.mulf %127, %129 : vector<16x16xf32>
    %131 = arith.addf %126, %130 : vector<16x16xf32>
    %132 = vector.extract_strided_slice %76 {offsets = [3, 3], sizes = [16, 16], strides = [1, 1]} : vector<20x20xf32> to vector<16x16xf32>
    %c43 = arith.constant 43 : index
    %133 = memref.load %arg1[%c43] : memref<101xf32, #tpu.memory_space<smem>>
    %134 = vector.broadcast %133 : f32 to vector<16x16xf32>
    %135 = arith.mulf %132, %134 : vector<16x16xf32>
    %136 = arith.addf %131, %135 : vector<16x16xf32>
    %137 = vector.extract_strided_slice %76 {offsets = [4, 2], sizes = [16, 16], strides = [1, 1]} : vector<20x20xf32> to vector<16x16xf32>
    %c47 = arith.constant 47 : index
    %138 = memref.load %arg1[%c47] : memref<101xf32, #tpu.memory_space<smem>>
    %139 = vector.broadcast %138 : f32 to vector<16x16xf32>
    %140 = arith.mulf %137, %139 : vector<16x16xf32>
    %141 = arith.addf %136, %140 : vector<16x16xf32>
    %142 = vector.extract_strided_slice %5 {offsets = [2, 0, 0], sizes = [1, 20, 20], strides = [1, 1, 1]} : vector<4x20x20xf32> to vector<1x20x20xf32>
    %143 = vector.shape_cast %142 : vector<1x20x20xf32> to vector<20x20xf32>
    %144 = vector.extract_strided_slice %143 {offsets = [0, 2], sizes = [16, 16], strides = [1, 1]} : vector<20x20xf32> to vector<16x16xf32>
    %c52 = arith.constant 52 : index
    %145 = memref.load %arg1[%c52] : memref<101xf32, #tpu.memory_space<smem>>
    %146 = vector.broadcast %145 : f32 to vector<16x16xf32>
    %147 = arith.mulf %144, %146 : vector<16x16xf32>
    %148 = arith.addf %141, %147 : vector<16x16xf32>
    %149 = vector.extract_strided_slice %143 {offsets = [1, 1], sizes = [16, 16], strides = [1, 1]} : vector<20x20xf32> to vector<16x16xf32>
    %c56 = arith.constant 56 : index
    %150 = memref.load %arg1[%c56] : memref<101xf32, #tpu.memory_space<smem>>
    %151 = vector.broadcast %150 : f32 to vector<16x16xf32>
    %152 = arith.mulf %149, %151 : vector<16x16xf32>
    %153 = arith.addf %148, %152 : vector<16x16xf32>
    %154 = vector.extract_strided_slice %143 {offsets = [1, 2], sizes = [16, 16], strides = [1, 1]} : vector<20x20xf32> to vector<16x16xf32>
    %c57 = arith.constant 57 : index
    %155 = memref.load %arg1[%c57] : memref<101xf32, #tpu.memory_space<smem>>
    %156 = vector.broadcast %155 : f32 to vector<16x16xf32>
    %157 = arith.mulf %154, %156 : vector<16x16xf32>
    %158 = arith.addf %153, %157 : vector<16x16xf32>
    %159 = vector.extract_strided_slice %143 {offsets = [1, 3], sizes = [16, 16], strides = [1, 1]} : vector<20x20xf32> to vector<16x16xf32>
    %c58 = arith.constant 58 : index
    %160 = memref.load %arg1[%c58] : memref<101xf32, #tpu.memory_space<smem>>
    %161 = vector.broadcast %160 : f32 to vector<16x16xf32>
    %162 = arith.mulf %159, %161 : vector<16x16xf32>
    %163 = arith.addf %158, %162 : vector<16x16xf32>
    %164 = vector.extract_strided_slice %143 {offsets = [2, 0], sizes = [16, 16], strides = [1, 1]} : vector<20x20xf32> to vector<16x16xf32>
    %c60 = arith.constant 60 : index
    %165 = memref.load %arg1[%c60] : memref<101xf32, #tpu.memory_space<smem>>
    %166 = vector.broadcast %165 : f32 to vector<16x16xf32>
    %167 = arith.mulf %164, %166 : vector<16x16xf32>
    %168 = arith.addf %163, %167 : vector<16x16xf32>
    %169 = vector.extract_strided_slice %143 {offsets = [2, 1], sizes = [16, 16], strides = [1, 1]} : vector<20x20xf32> to vector<16x16xf32>
    %c61 = arith.constant 61 : index
    %170 = memref.load %arg1[%c61] : memref<101xf32, #tpu.memory_space<smem>>
    %171 = vector.broadcast %170 : f32 to vector<16x16xf32>
    %172 = arith.mulf %169, %171 : vector<16x16xf32>
    %173 = arith.addf %168, %172 : vector<16x16xf32>
    %174 = vector.extract_strided_slice %143 {offsets = [2, 2], sizes = [16, 16], strides = [1, 1]} : vector<20x20xf32> to vector<16x16xf32>
    %c62 = arith.constant 62 : index
    %175 = memref.load %arg1[%c62] : memref<101xf32, #tpu.memory_space<smem>>
    %176 = vector.broadcast %175 : f32 to vector<16x16xf32>
    %177 = arith.mulf %174, %176 : vector<16x16xf32>
    %178 = arith.addf %173, %177 : vector<16x16xf32>
    %179 = vector.extract_strided_slice %143 {offsets = [2, 3], sizes = [16, 16], strides = [1, 1]} : vector<20x20xf32> to vector<16x16xf32>
    %c63 = arith.constant 63 : index
    %180 = memref.load %arg1[%c63] : memref<101xf32, #tpu.memory_space<smem>>
    %181 = vector.broadcast %180 : f32 to vector<16x16xf32>
    %182 = arith.mulf %179, %181 : vector<16x16xf32>
    %183 = arith.addf %178, %182 : vector<16x16xf32>
    %184 = vector.extract_strided_slice %143 {offsets = [2, 4], sizes = [16, 16], strides = [1, 1]} : vector<20x20xf32> to vector<16x16xf32>
    %c64 = arith.constant 64 : index
    %185 = memref.load %arg1[%c64] : memref<101xf32, #tpu.memory_space<smem>>
    %186 = vector.broadcast %185 : f32 to vector<16x16xf32>
    %187 = arith.mulf %184, %186 : vector<16x16xf32>
    %188 = arith.addf %183, %187 : vector<16x16xf32>
    %189 = vector.extract_strided_slice %143 {offsets = [3, 1], sizes = [16, 16], strides = [1, 1]} : vector<20x20xf32> to vector<16x16xf32>
    %c66 = arith.constant 66 : index
    %190 = memref.load %arg1[%c66] : memref<101xf32, #tpu.memory_space<smem>>
    %191 = vector.broadcast %190 : f32 to vector<16x16xf32>
    %192 = arith.mulf %189, %191 : vector<16x16xf32>
    %193 = arith.addf %188, %192 : vector<16x16xf32>
    %194 = vector.extract_strided_slice %143 {offsets = [3, 2], sizes = [16, 16], strides = [1, 1]} : vector<20x20xf32> to vector<16x16xf32>
    %c67 = arith.constant 67 : index
    %195 = memref.load %arg1[%c67] : memref<101xf32, #tpu.memory_space<smem>>
    %196 = vector.broadcast %195 : f32 to vector<16x16xf32>
    %197 = arith.mulf %194, %196 : vector<16x16xf32>
    %198 = arith.addf %193, %197 : vector<16x16xf32>
    %199 = vector.extract_strided_slice %143 {offsets = [3, 3], sizes = [16, 16], strides = [1, 1]} : vector<20x20xf32> to vector<16x16xf32>
    %c68 = arith.constant 68 : index
    %200 = memref.load %arg1[%c68] : memref<101xf32, #tpu.memory_space<smem>>
    %201 = vector.broadcast %200 : f32 to vector<16x16xf32>
    %202 = arith.mulf %199, %201 : vector<16x16xf32>
    %203 = arith.addf %198, %202 : vector<16x16xf32>
    %204 = vector.extract_strided_slice %143 {offsets = [4, 2], sizes = [16, 16], strides = [1, 1]} : vector<20x20xf32> to vector<16x16xf32>
    %c72 = arith.constant 72 : index
    %205 = memref.load %arg1[%c72] : memref<101xf32, #tpu.memory_space<smem>>
    %206 = vector.broadcast %205 : f32 to vector<16x16xf32>
    %207 = arith.mulf %204, %206 : vector<16x16xf32>
    %208 = arith.addf %203, %207 : vector<16x16xf32>
    %209 = vector.extract_strided_slice %5 {offsets = [3, 0, 0], sizes = [1, 20, 20], strides = [1, 1, 1]} : vector<4x20x20xf32> to vector<1x20x20xf32>
    %210 = vector.shape_cast %209 : vector<1x20x20xf32> to vector<20x20xf32>
    %211 = vector.extract_strided_slice %210 {offsets = [0, 2], sizes = [16, 16], strides = [1, 1]} : vector<20x20xf32> to vector<16x16xf32>
    %c77 = arith.constant 77 : index
    %212 = memref.load %arg1[%c77] : memref<101xf32, #tpu.memory_space<smem>>
    %213 = vector.broadcast %212 : f32 to vector<16x16xf32>
    %214 = arith.mulf %211, %213 : vector<16x16xf32>
    %215 = arith.addf %208, %214 : vector<16x16xf32>
    %216 = vector.extract_strided_slice %210 {offsets = [1, 1], sizes = [16, 16], strides = [1, 1]} : vector<20x20xf32> to vector<16x16xf32>
    %c81 = arith.constant 81 : index
    %217 = memref.load %arg1[%c81] : memref<101xf32, #tpu.memory_space<smem>>
    %218 = vector.broadcast %217 : f32 to vector<16x16xf32>
    %219 = arith.mulf %216, %218 : vector<16x16xf32>
    %220 = arith.addf %215, %219 : vector<16x16xf32>
    %221 = vector.extract_strided_slice %210 {offsets = [1, 2], sizes = [16, 16], strides = [1, 1]} : vector<20x20xf32> to vector<16x16xf32>
    %c82 = arith.constant 82 : index
    %222 = memref.load %arg1[%c82] : memref<101xf32, #tpu.memory_space<smem>>
    %223 = vector.broadcast %222 : f32 to vector<16x16xf32>
    %224 = arith.mulf %221, %223 : vector<16x16xf32>
    %225 = arith.addf %220, %224 : vector<16x16xf32>
    %226 = vector.extract_strided_slice %210 {offsets = [1, 3], sizes = [16, 16], strides = [1, 1]} : vector<20x20xf32> to vector<16x16xf32>
    %c83 = arith.constant 83 : index
    %227 = memref.load %arg1[%c83] : memref<101xf32, #tpu.memory_space<smem>>
    %228 = vector.broadcast %227 : f32 to vector<16x16xf32>
    %229 = arith.mulf %226, %228 : vector<16x16xf32>
    %230 = arith.addf %225, %229 : vector<16x16xf32>
    %231 = vector.extract_strided_slice %210 {offsets = [2, 0], sizes = [16, 16], strides = [1, 1]} : vector<20x20xf32> to vector<16x16xf32>
    %c85 = arith.constant 85 : index
    %232 = memref.load %arg1[%c85] : memref<101xf32, #tpu.memory_space<smem>>
    %233 = vector.broadcast %232 : f32 to vector<16x16xf32>
    %234 = arith.mulf %231, %233 : vector<16x16xf32>
    %235 = arith.addf %230, %234 : vector<16x16xf32>
    %236 = vector.extract_strided_slice %210 {offsets = [2, 1], sizes = [16, 16], strides = [1, 1]} : vector<20x20xf32> to vector<16x16xf32>
    %c86 = arith.constant 86 : index
    %237 = memref.load %arg1[%c86] : memref<101xf32, #tpu.memory_space<smem>>
    %238 = vector.broadcast %237 : f32 to vector<16x16xf32>
    %239 = arith.mulf %236, %238 : vector<16x16xf32>
    %240 = arith.addf %235, %239 : vector<16x16xf32>
    %241 = vector.extract_strided_slice %210 {offsets = [2, 2], sizes = [16, 16], strides = [1, 1]} : vector<20x20xf32> to vector<16x16xf32>
    %c87 = arith.constant 87 : index
    %242 = memref.load %arg1[%c87] : memref<101xf32, #tpu.memory_space<smem>>
    %243 = vector.broadcast %242 : f32 to vector<16x16xf32>
    %244 = arith.mulf %241, %243 : vector<16x16xf32>
    %245 = arith.addf %240, %244 : vector<16x16xf32>
    %246 = vector.extract_strided_slice %210 {offsets = [2, 3], sizes = [16, 16], strides = [1, 1]} : vector<20x20xf32> to vector<16x16xf32>
    %c88 = arith.constant 88 : index
    %247 = memref.load %arg1[%c88] : memref<101xf32, #tpu.memory_space<smem>>
    %248 = vector.broadcast %247 : f32 to vector<16x16xf32>
    %249 = arith.mulf %246, %248 : vector<16x16xf32>
    %250 = arith.addf %245, %249 : vector<16x16xf32>
    %251 = vector.extract_strided_slice %210 {offsets = [2, 4], sizes = [16, 16], strides = [1, 1]} : vector<20x20xf32> to vector<16x16xf32>
    %c89 = arith.constant 89 : index
    %252 = memref.load %arg1[%c89] : memref<101xf32, #tpu.memory_space<smem>>
    %253 = vector.broadcast %252 : f32 to vector<16x16xf32>
    %254 = arith.mulf %251, %253 : vector<16x16xf32>
    %255 = arith.addf %250, %254 : vector<16x16xf32>
    %256 = vector.extract_strided_slice %210 {offsets = [3, 1], sizes = [16, 16], strides = [1, 1]} : vector<20x20xf32> to vector<16x16xf32>
    %c91 = arith.constant 91 : index
    %257 = memref.load %arg1[%c91] : memref<101xf32, #tpu.memory_space<smem>>
    %258 = vector.broadcast %257 : f32 to vector<16x16xf32>
    %259 = arith.mulf %256, %258 : vector<16x16xf32>
    %260 = arith.addf %255, %259 : vector<16x16xf32>
    %261 = vector.extract_strided_slice %210 {offsets = [3, 2], sizes = [16, 16], strides = [1, 1]} : vector<20x20xf32> to vector<16x16xf32>
    %c92 = arith.constant 92 : index
    %262 = memref.load %arg1[%c92] : memref<101xf32, #tpu.memory_space<smem>>
    %263 = vector.broadcast %262 : f32 to vector<16x16xf32>
    %264 = arith.mulf %261, %263 : vector<16x16xf32>
    %265 = arith.addf %260, %264 : vector<16x16xf32>
    %266 = vector.extract_strided_slice %210 {offsets = [3, 3], sizes = [16, 16], strides = [1, 1]} : vector<20x20xf32> to vector<16x16xf32>
    %c93 = arith.constant 93 : index
    %267 = memref.load %arg1[%c93] : memref<101xf32, #tpu.memory_space<smem>>
    %268 = vector.broadcast %267 : f32 to vector<16x16xf32>
    %269 = arith.mulf %266, %268 : vector<16x16xf32>
    %270 = arith.addf %265, %269 : vector<16x16xf32>
    %271 = vector.extract_strided_slice %210 {offsets = [4, 2], sizes = [16, 16], strides = [1, 1]} : vector<20x20xf32> to vector<16x16xf32>
    %c97 = arith.constant 97 : index
    %272 = memref.load %arg1[%c97] : memref<101xf32, #tpu.memory_space<smem>>
    %273 = vector.broadcast %272 : f32 to vector<16x16xf32>
    %274 = arith.mulf %271, %273 : vector<16x16xf32>
    %275 = arith.addf %270, %274 : vector<16x16xf32>
    %cst_12 = arith.constant 0.000000e+00 : f32
    %276 = vector.broadcast %cst_12 : f32 to vector<16x16xf32>
    %277 = arith.subf %276, %275 : vector<16x16xf32>
    %278 = math.exp %277 : vector<16x16xf32>
    %cst_13 = arith.constant 1.000000e+00 : f32
    %279 = vector.broadcast %cst_13 : f32 to vector<16x16xf32>
    %280 = arith.addf %279, %278 : vector<16x16xf32>
    %cst_14 = arith.constant 1.000000e+00 : f32
    %281 = vector.broadcast %cst_14 : f32 to vector<16x16xf32>
    %282 = arith.divf %281, %280 : vector<16x16xf32>
    %283 = vector.shape_cast %282 : vector<16x16xf32> to vector<1x16x16xf32>
    %284 = vector.broadcast %283 : vector<1x16x16xf32> to vector<4x16x16xf32>
    %285 = arith.mulf %3, %284 : vector<4x16x16xf32>
    %c0_15 = arith.constant 0 : index
    %c0_16 = arith.constant 0 : index
    %c0_17 = arith.constant 0 : index
    %c0_18 = arith.constant 0 : index
    %286 = vector.load %arg3[%c0_15, %c0_16, %c0_17, %c0_18] : memref<2x4x16x16xf32, #tpu.memory_space<vmem>>, vector<1x4x16x16xf32>
    %287 = vector.shape_cast %286 : vector<1x4x16x16xf32> to vector<4x16x16xf32>
    %288 = vector.shape_cast %285 : vector<4x16x16xf32> to vector<1x4x16x16xf32>
    tpu.vector_store %arg3[%c0_15, %c0_16, %c0_17, %c0_18], %288 {strides = array<i32>} : memref<2x4x16x16xf32, #tpu.memory_space<vmem>>, vector<1x4x16x16xf32>,
    %c1 = arith.constant 1 : index
    %c0_19 = arith.constant 0 : index
    %c0_20 = arith.constant 0 : index
    %c0_21 = arith.constant 0 : index
    %289 = vector.load %arg2[%c1, %c0_19, %c0_20, %c0_21] : memref<2x4x16x16xf32, #tpu.memory_space<vmem>>, vector<1x4x16x16xf32>
    %290 = vector.shape_cast %289 : vector<1x4x16x16xf32> to vector<4x16x16xf32>
    %c0_22 = arith.constant 0 : index
    %c2_23 = arith.constant 2 : index
    %c2_24 = arith.constant 2 : index
    %291 = vector.load %arg4[%c0_22, %c2_23, %c2_24] : memref<4x20x20xf32, #tpu.memory_space<vmem>>, vector<4x16x16xf32>
    tpu.vector_store %arg4[%c0_22, %c2_23, %c2_24], %290 {strides = array<i32>} : memref<4x20x20xf32, #tpu.memory_space<vmem>>, vector<4x16x16xf32>,
    %c0_25 = arith.constant 0 : index
    %c0_26 = arith.constant 0 : index
    %c0_27 = arith.constant 0 : index
    %292 = vector.load %arg4[%c0_25, %c0_26, %c0_27] : memref<4x20x20xf32, #tpu.memory_space<vmem>>, vector<4x20x20xf32>
    %c100_28 = arith.constant 100 : index
    %293 = memref.load %arg1[%c100_28] : memref<101xf32, #tpu.memory_space<smem>>
    %294 = vector.broadcast %293 : f32 to vector<16x16xf32>
    %295 = vector.extract_strided_slice %292 {offsets = [0, 0, 0], sizes = [1, 20, 20], strides = [1, 1, 1]} : vector<4x20x20xf32> to vector<1x20x20xf32>
    %296 = vector.shape_cast %295 : vector<1x20x20xf32> to vector<20x20xf32>
    %297 = vector.extract_strided_slice %296 {offsets = [0, 2], sizes = [16, 16], strides = [1, 1]} : vector<20x20xf32> to vector<16x16xf32>
    %c2_29 = arith.constant 2 : index
    %298 = memref.load %arg1[%c2_29] : memref<101xf32, #tpu.memory_space<smem>>
    %299 = vector.broadcast %298 : f32 to vector<16x16xf32>
    %300 = arith.mulf %297, %299 : vector<16x16xf32>
    %301 = arith.addf %294, %300 : vector<16x16xf32>
    %302 = vector.extract_strided_slice %296 {offsets = [1, 1], sizes = [16, 16], strides = [1, 1]} : vector<20x20xf32> to vector<16x16xf32>
    %c6_30 = arith.constant 6 : index
    %303 = memref.load %arg1[%c6_30] : memref<101xf32, #tpu.memory_space<smem>>
    %304 = vector.broadcast %303 : f32 to vector<16x16xf32>
    %305 = arith.mulf %302, %304 : vector<16x16xf32>
    %306 = arith.addf %301, %305 : vector<16x16xf32>
    %307 = vector.extract_strided_slice %296 {offsets = [1, 2], sizes = [16, 16], strides = [1, 1]} : vector<20x20xf32> to vector<16x16xf32>
    %c7_31 = arith.constant 7 : index
    %308 = memref.load %arg1[%c7_31] : memref<101xf32, #tpu.memory_space<smem>>
    %309 = vector.broadcast %308 : f32 to vector<16x16xf32>
    %310 = arith.mulf %307, %309 : vector<16x16xf32>
    %311 = arith.addf %306, %310 : vector<16x16xf32>
    %312 = vector.extract_strided_slice %296 {offsets = [1, 3], sizes = [16, 16], strides = [1, 1]} : vector<20x20xf32> to vector<16x16xf32>
    %c8_32 = arith.constant 8 : index
    %313 = memref.load %arg1[%c8_32] : memref<101xf32, #tpu.memory_space<smem>>
    %314 = vector.broadcast %313 : f32 to vector<16x16xf32>
    %315 = arith.mulf %312, %314 : vector<16x16xf32>
    %316 = arith.addf %311, %315 : vector<16x16xf32>
    %317 = vector.extract_strided_slice %296 {offsets = [2, 0], sizes = [16, 16], strides = [1, 1]} : vector<20x20xf32> to vector<16x16xf32>
    %c10_33 = arith.constant 10 : index
    %318 = memref.load %arg1[%c10_33] : memref<101xf32, #tpu.memory_space<smem>>
    %319 = vector.broadcast %318 : f32 to vector<16x16xf32>
    %320 = arith.mulf %317, %319 : vector<16x16xf32>
    %321 = arith.addf %316, %320 : vector<16x16xf32>
    %322 = vector.extract_strided_slice %296 {offsets = [2, 1], sizes = [16, 16], strides = [1, 1]} : vector<20x20xf32> to vector<16x16xf32>
    %c11_34 = arith.constant 11 : index
    %323 = memref.load %arg1[%c11_34] : memref<101xf32, #tpu.memory_space<smem>>
    %324 = vector.broadcast %323 : f32 to vector<16x16xf32>
    %325 = arith.mulf %322, %324 : vector<16x16xf32>
    %326 = arith.addf %321, %325 : vector<16x16xf32>
    %327 = vector.extract_strided_slice %296 {offsets = [2, 2], sizes = [16, 16], strides = [1, 1]} : vector<20x20xf32> to vector<16x16xf32>
    %c12_35 = arith.constant 12 : index
    %328 = memref.load %arg1[%c12_35] : memref<101xf32, #tpu.memory_space<smem>>
    %329 = vector.broadcast %328 : f32 to vector<16x16xf32>
    %330 = arith.mulf %327, %329 : vector<16x16xf32>
    %331 = arith.addf %326, %330 : vector<16x16xf32>
    %332 = vector.extract_strided_slice %296 {offsets = [2, 3], sizes = [16, 16], strides = [1, 1]} : vector<20x20xf32> to vector<16x16xf32>
    %c13_36 = arith.constant 13 : index
    %333 = memref.load %arg1[%c13_36] : memref<101xf32, #tpu.memory_space<smem>>
    %334 = vector.broadcast %333 : f32 to vector<16x16xf32>
    %335 = arith.mulf %332, %334 : vector<16x16xf32>
    %336 = arith.addf %331, %335 : vector<16x16xf32>
    %337 = vector.extract_strided_slice %296 {offsets = [2, 4], sizes = [16, 16], strides = [1, 1]} : vector<20x20xf32> to vector<16x16xf32>
    %c14_37 = arith.constant 14 : index
    %338 = memref.load %arg1[%c14_37] : memref<101xf32, #tpu.memory_space<smem>>
    %339 = vector.broadcast %338 : f32 to vector<16x16xf32>
    %340 = arith.mulf %337, %339 : vector<16x16xf32>
    %341 = arith.addf %336, %340 : vector<16x16xf32>
    %342 = vector.extract_strided_slice %296 {offsets = [3, 1], sizes = [16, 16], strides = [1, 1]} : vector<20x20xf32> to vector<16x16xf32>
    %c16_38 = arith.constant 16 : index
    %343 = memref.load %arg1[%c16_38] : memref<101xf32, #tpu.memory_space<smem>>
    %344 = vector.broadcast %343 : f32 to vector<16x16xf32>
    %345 = arith.mulf %342, %344 : vector<16x16xf32>
    %346 = arith.addf %341, %345 : vector<16x16xf32>
    %347 = vector.extract_strided_slice %296 {offsets = [3, 2], sizes = [16, 16], strides = [1, 1]} : vector<20x20xf32> to vector<16x16xf32>
    %c17_39 = arith.constant 17 : index
    %348 = memref.load %arg1[%c17_39] : memref<101xf32, #tpu.memory_space<smem>>
    %349 = vector.broadcast %348 : f32 to vector<16x16xf32>
    %350 = arith.mulf %347, %349 : vector<16x16xf32>
    %351 = arith.addf %346, %350 : vector<16x16xf32>
    %352 = vector.extract_strided_slice %296 {offsets = [3, 3], sizes = [16, 16], strides = [1, 1]} : vector<20x20xf32> to vector<16x16xf32>
    %c18_40 = arith.constant 18 : index
    %353 = memref.load %arg1[%c18_40] : memref<101xf32, #tpu.memory_space<smem>>
    %354 = vector.broadcast %353 : f32 to vector<16x16xf32>
    %355 = arith.mulf %352, %354 : vector<16x16xf32>
    %356 = arith.addf %351, %355 : vector<16x16xf32>
    %357 = vector.extract_strided_slice %296 {offsets = [4, 2], sizes = [16, 16], strides = [1, 1]} : vector<20x20xf32> to vector<16x16xf32>
    %c22_41 = arith.constant 22 : index
    %358 = memref.load %arg1[%c22_41] : memref<101xf32, #tpu.memory_space<smem>>
    %359 = vector.broadcast %358 : f32 to vector<16x16xf32>
    %360 = arith.mulf %357, %359 : vector<16x16xf32>
    %361 = arith.addf %356, %360 : vector<16x16xf32>
    %362 = vector.extract_strided_slice %292 {offsets = [1, 0, 0], sizes = [1, 20, 20], strides = [1, 1, 1]} : vector<4x20x20xf32> to vector<1x20x20xf32>
    %363 = vector.shape_cast %362 : vector<1x20x20xf32> to vector<20x20xf32>
    %364 = vector.extract_strided_slice %363 {offsets = [0, 2], sizes = [16, 16], strides = [1, 1]} : vector<20x20xf32> to vector<16x16xf32>
    %c27_42 = arith.constant 27 : index
    %365 = memref.load %arg1[%c27_42] : memref<101xf32, #tpu.memory_space<smem>>
    %366 = vector.broadcast %365 : f32 to vector<16x16xf32>
    %367 = arith.mulf %364, %366 : vector<16x16xf32>
    %368 = arith.addf %361, %367 : vector<16x16xf32>
    %369 = vector.extract_strided_slice %363 {offsets = [1, 1], sizes = [16, 16], strides = [1, 1]} : vector<20x20xf32> to vector<16x16xf32>
    %c31_43 = arith.constant 31 : index
    %370 = memref.load %arg1[%c31_43] : memref<101xf32, #tpu.memory_space<smem>>
    %371 = vector.broadcast %370 : f32 to vector<16x16xf32>
    %372 = arith.mulf %369, %371 : vector<16x16xf32>
    %373 = arith.addf %368, %372 : vector<16x16xf32>
    %374 = vector.extract_strided_slice %363 {offsets = [1, 2], sizes = [16, 16], strides = [1, 1]} : vector<20x20xf32> to vector<16x16xf32>
    %c32_44 = arith.constant 32 : index
    %375 = memref.load %arg1[%c32_44] : memref<101xf32, #tpu.memory_space<smem>>
    %376 = vector.broadcast %375 : f32 to vector<16x16xf32>
    %377 = arith.mulf %374, %376 : vector<16x16xf32>
    %378 = arith.addf %373, %377 : vector<16x16xf32>
    %379 = vector.extract_strided_slice %363 {offsets = [1, 3], sizes = [16, 16], strides = [1, 1]} : vector<20x20xf32> to vector<16x16xf32>
    %c33_45 = arith.constant 33 : index
    %380 = memref.load %arg1[%c33_45] : memref<101xf32, #tpu.memory_space<smem>>
    %381 = vector.broadcast %380 : f32 to vector<16x16xf32>
    %382 = arith.mulf %379, %381 : vector<16x16xf32>
    %383 = arith.addf %378, %382 : vector<16x16xf32>
    %384 = vector.extract_strided_slice %363 {offsets = [2, 0], sizes = [16, 16], strides = [1, 1]} : vector<20x20xf32> to vector<16x16xf32>
    %c35_46 = arith.constant 35 : index
    %385 = memref.load %arg1[%c35_46] : memref<101xf32, #tpu.memory_space<smem>>
    %386 = vector.broadcast %385 : f32 to vector<16x16xf32>
    %387 = arith.mulf %384, %386 : vector<16x16xf32>
    %388 = arith.addf %383, %387 : vector<16x16xf32>
    %389 = vector.extract_strided_slice %363 {offsets = [2, 1], sizes = [16, 16], strides = [1, 1]} : vector<20x20xf32> to vector<16x16xf32>
    %c36_47 = arith.constant 36 : index
    %390 = memref.load %arg1[%c36_47] : memref<101xf32, #tpu.memory_space<smem>>
    %391 = vector.broadcast %390 : f32 to vector<16x16xf32>
    %392 = arith.mulf %389, %391 : vector<16x16xf32>
    %393 = arith.addf %388, %392 : vector<16x16xf32>
    %394 = vector.extract_strided_slice %363 {offsets = [2, 2], sizes = [16, 16], strides = [1, 1]} : vector<20x20xf32> to vector<16x16xf32>
    %c37_48 = arith.constant 37 : index
    %395 = memref.load %arg1[%c37_48] : memref<101xf32, #tpu.memory_space<smem>>
    %396 = vector.broadcast %395 : f32 to vector<16x16xf32>
    %397 = arith.mulf %394, %396 : vector<16x16xf32>
    %398 = arith.addf %393, %397 : vector<16x16xf32>
    %399 = vector.extract_strided_slice %363 {offsets = [2, 3], sizes = [16, 16], strides = [1, 1]} : vector<20x20xf32> to vector<16x16xf32>
    %c38_49 = arith.constant 38 : index
    %400 = memref.load %arg1[%c38_49] : memref<101xf32, #tpu.memory_space<smem>>
    %401 = vector.broadcast %400 : f32 to vector<16x16xf32>
    %402 = arith.mulf %399, %401 : vector<16x16xf32>
    %403 = arith.addf %398, %402 : vector<16x16xf32>
    %404 = vector.extract_strided_slice %363 {offsets = [2, 4], sizes = [16, 16], strides = [1, 1]} : vector<20x20xf32> to vector<16x16xf32>
    %c39_50 = arith.constant 39 : index
    %405 = memref.load %arg1[%c39_50] : memref<101xf32, #tpu.memory_space<smem>>
    %406 = vector.broadcast %405 : f32 to vector<16x16xf32>
    %407 = arith.mulf %404, %406 : vector<16x16xf32>
    %408 = arith.addf %403, %407 : vector<16x16xf32>
    %409 = vector.extract_strided_slice %363 {offsets = [3, 1], sizes = [16, 16], strides = [1, 1]} : vector<20x20xf32> to vector<16x16xf32>
    %c41_51 = arith.constant 41 : index
    %410 = memref.load %arg1[%c41_51] : memref<101xf32, #tpu.memory_space<smem>>
    %411 = vector.broadcast %410 : f32 to vector<16x16xf32>
    %412 = arith.mulf %409, %411 : vector<16x16xf32>
    %413 = arith.addf %408, %412 : vector<16x16xf32>
    %414 = vector.extract_strided_slice %363 {offsets = [3, 2], sizes = [16, 16], strides = [1, 1]} : vector<20x20xf32> to vector<16x16xf32>
    %c42_52 = arith.constant 42 : index
    %415 = memref.load %arg1[%c42_52] : memref<101xf32, #tpu.memory_space<smem>>
    %416 = vector.broadcast %415 : f32 to vector<16x16xf32>
    %417 = arith.mulf %414, %416 : vector<16x16xf32>
    %418 = arith.addf %413, %417 : vector<16x16xf32>
    %419 = vector.extract_strided_slice %363 {offsets = [3, 3], sizes = [16, 16], strides = [1, 1]} : vector<20x20xf32> to vector<16x16xf32>
    %c43_53 = arith.constant 43 : index
    %420 = memref.load %arg1[%c43_53] : memref<101xf32, #tpu.memory_space<smem>>
    %421 = vector.broadcast %420 : f32 to vector<16x16xf32>
    %422 = arith.mulf %419, %421 : vector<16x16xf32>
    %423 = arith.addf %418, %422 : vector<16x16xf32>
    %424 = vector.extract_strided_slice %363 {offsets = [4, 2], sizes = [16, 16], strides = [1, 1]} : vector<20x20xf32> to vector<16x16xf32>
    %c47_54 = arith.constant 47 : index
    %425 = memref.load %arg1[%c47_54] : memref<101xf32, #tpu.memory_space<smem>>
    %426 = vector.broadcast %425 : f32 to vector<16x16xf32>
    %427 = arith.mulf %424, %426 : vector<16x16xf32>
    %428 = arith.addf %423, %427 : vector<16x16xf32>
    %429 = vector.extract_strided_slice %292 {offsets = [2, 0, 0], sizes = [1, 20, 20], strides = [1, 1, 1]} : vector<4x20x20xf32> to vector<1x20x20xf32>
    %430 = vector.shape_cast %429 : vector<1x20x20xf32> to vector<20x20xf32>
    %431 = vector.extract_strided_slice %430 {offsets = [0, 2], sizes = [16, 16], strides = [1, 1]} : vector<20x20xf32> to vector<16x16xf32>
    %c52_55 = arith.constant 52 : index
    %432 = memref.load %arg1[%c52_55] : memref<101xf32, #tpu.memory_space<smem>>
    %433 = vector.broadcast %432 : f32 to vector<16x16xf32>
    %434 = arith.mulf %431, %433 : vector<16x16xf32>
    %435 = arith.addf %428, %434 : vector<16x16xf32>
    %436 = vector.extract_strided_slice %430 {offsets = [1, 1], sizes = [16, 16], strides = [1, 1]} : vector<20x20xf32> to vector<16x16xf32>
    %c56_56 = arith.constant 56 : index
    %437 = memref.load %arg1[%c56_56] : memref<101xf32, #tpu.memory_space<smem>>
    %438 = vector.broadcast %437 : f32 to vector<16x16xf32>
    %439 = arith.mulf %436, %438 : vector<16x16xf32>
    %440 = arith.addf %435, %439 : vector<16x16xf32>
    %441 = vector.extract_strided_slice %430 {offsets = [1, 2], sizes = [16, 16], strides = [1, 1]} : vector<20x20xf32> to vector<16x16xf32>
    %c57_57 = arith.constant 57 : index
    %442 = memref.load %arg1[%c57_57] : memref<101xf32, #tpu.memory_space<smem>>
    %443 = vector.broadcast %442 : f32 to vector<16x16xf32>
    %444 = arith.mulf %441, %443 : vector<16x16xf32>
    %445 = arith.addf %440, %444 : vector<16x16xf32>
    %446 = vector.extract_strided_slice %430 {offsets = [1, 3], sizes = [16, 16], strides = [1, 1]} : vector<20x20xf32> to vector<16x16xf32>
    %c58_58 = arith.constant 58 : index
    %447 = memref.load %arg1[%c58_58] : memref<101xf32, #tpu.memory_space<smem>>
    %448 = vector.broadcast %447 : f32 to vector<16x16xf32>
    %449 = arith.mulf %446, %448 : vector<16x16xf32>
    %450 = arith.addf %445, %449 : vector<16x16xf32>
    %451 = vector.extract_strided_slice %430 {offsets = [2, 0], sizes = [16, 16], strides = [1, 1]} : vector<20x20xf32> to vector<16x16xf32>
    %c60_59 = arith.constant 60 : index
    %452 = memref.load %arg1[%c60_59] : memref<101xf32, #tpu.memory_space<smem>>
    %453 = vector.broadcast %452 : f32 to vector<16x16xf32>
    %454 = arith.mulf %451, %453 : vector<16x16xf32>
    %455 = arith.addf %450, %454 : vector<16x16xf32>
    %456 = vector.extract_strided_slice %430 {offsets = [2, 1], sizes = [16, 16], strides = [1, 1]} : vector<20x20xf32> to vector<16x16xf32>
    %c61_60 = arith.constant 61 : index
    %457 = memref.load %arg1[%c61_60] : memref<101xf32, #tpu.memory_space<smem>>
    %458 = vector.broadcast %457 : f32 to vector<16x16xf32>
    %459 = arith.mulf %456, %458 : vector<16x16xf32>
    %460 = arith.addf %455, %459 : vector<16x16xf32>
    %461 = vector.extract_strided_slice %430 {offsets = [2, 2], sizes = [16, 16], strides = [1, 1]} : vector<20x20xf32> to vector<16x16xf32>
    %c62_61 = arith.constant 62 : index
    %462 = memref.load %arg1[%c62_61] : memref<101xf32, #tpu.memory_space<smem>>
    %463 = vector.broadcast %462 : f32 to vector<16x16xf32>
    %464 = arith.mulf %461, %463 : vector<16x16xf32>
    %465 = arith.addf %460, %464 : vector<16x16xf32>
    %466 = vector.extract_strided_slice %430 {offsets = [2, 3], sizes = [16, 16], strides = [1, 1]} : vector<20x20xf32> to vector<16x16xf32>
    %c63_62 = arith.constant 63 : index
    %467 = memref.load %arg1[%c63_62] : memref<101xf32, #tpu.memory_space<smem>>
    %468 = vector.broadcast %467 : f32 to vector<16x16xf32>
    %469 = arith.mulf %466, %468 : vector<16x16xf32>
    %470 = arith.addf %465, %469 : vector<16x16xf32>
    %471 = vector.extract_strided_slice %430 {offsets = [2, 4], sizes = [16, 16], strides = [1, 1]} : vector<20x20xf32> to vector<16x16xf32>
    %c64_63 = arith.constant 64 : index
    %472 = memref.load %arg1[%c64_63] : memref<101xf32, #tpu.memory_space<smem>>
    %473 = vector.broadcast %472 : f32 to vector<16x16xf32>
    %474 = arith.mulf %471, %473 : vector<16x16xf32>
    %475 = arith.addf %470, %474 : vector<16x16xf32>
    %476 = vector.extract_strided_slice %430 {offsets = [3, 1], sizes = [16, 16], strides = [1, 1]} : vector<20x20xf32> to vector<16x16xf32>
    %c66_64 = arith.constant 66 : index
    %477 = memref.load %arg1[%c66_64] : memref<101xf32, #tpu.memory_space<smem>>
    %478 = vector.broadcast %477 : f32 to vector<16x16xf32>
    %479 = arith.mulf %476, %478 : vector<16x16xf32>
    %480 = arith.addf %475, %479 : vector<16x16xf32>
    %481 = vector.extract_strided_slice %430 {offsets = [3, 2], sizes = [16, 16], strides = [1, 1]} : vector<20x20xf32> to vector<16x16xf32>
    %c67_65 = arith.constant 67 : index
    %482 = memref.load %arg1[%c67_65] : memref<101xf32, #tpu.memory_space<smem>>
    %483 = vector.broadcast %482 : f32 to vector<16x16xf32>
    %484 = arith.mulf %481, %483 : vector<16x16xf32>
    %485 = arith.addf %480, %484 : vector<16x16xf32>
    %486 = vector.extract_strided_slice %430 {offsets = [3, 3], sizes = [16, 16], strides = [1, 1]} : vector<20x20xf32> to vector<16x16xf32>
    %c68_66 = arith.constant 68 : index
    %487 = memref.load %arg1[%c68_66] : memref<101xf32, #tpu.memory_space<smem>>
    %488 = vector.broadcast %487 : f32 to vector<16x16xf32>
    %489 = arith.mulf %486, %488 : vector<16x16xf32>
    %490 = arith.addf %485, %489 : vector<16x16xf32>
    %491 = vector.extract_strided_slice %430 {offsets = [4, 2], sizes = [16, 16], strides = [1, 1]} : vector<20x20xf32> to vector<16x16xf32>
    %c72_67 = arith.constant 72 : index
    %492 = memref.load %arg1[%c72_67] : memref<101xf32, #tpu.memory_space<smem>>
    %493 = vector.broadcast %492 : f32 to vector<16x16xf32>
    %494 = arith.mulf %491, %493 : vector<16x16xf32>
    %495 = arith.addf %490, %494 : vector<16x16xf32>
    %496 = vector.extract_strided_slice %292 {offsets = [3, 0, 0], sizes = [1, 20, 20], strides = [1, 1, 1]} : vector<4x20x20xf32> to vector<1x20x20xf32>
    %497 = vector.shape_cast %496 : vector<1x20x20xf32> to vector<20x20xf32>
    %498 = vector.extract_strided_slice %497 {offsets = [0, 2], sizes = [16, 16], strides = [1, 1]} : vector<20x20xf32> to vector<16x16xf32>
    %c77_68 = arith.constant 77 : index
    %499 = memref.load %arg1[%c77_68] : memref<101xf32, #tpu.memory_space<smem>>
    %500 = vector.broadcast %499 : f32 to vector<16x16xf32>
    %501 = arith.mulf %498, %500 : vector<16x16xf32>
    %502 = arith.addf %495, %501 : vector<16x16xf32>
    %503 = vector.extract_strided_slice %497 {offsets = [1, 1], sizes = [16, 16], strides = [1, 1]} : vector<20x20xf32> to vector<16x16xf32>
    %c81_69 = arith.constant 81 : index
    %504 = memref.load %arg1[%c81_69] : memref<101xf32, #tpu.memory_space<smem>>
    %505 = vector.broadcast %504 : f32 to vector<16x16xf32>
    %506 = arith.mulf %503, %505 : vector<16x16xf32>
    %507 = arith.addf %502, %506 : vector<16x16xf32>
    %508 = vector.extract_strided_slice %497 {offsets = [1, 2], sizes = [16, 16], strides = [1, 1]} : vector<20x20xf32> to vector<16x16xf32>
    %c82_70 = arith.constant 82 : index
    %509 = memref.load %arg1[%c82_70] : memref<101xf32, #tpu.memory_space<smem>>
    %510 = vector.broadcast %509 : f32 to vector<16x16xf32>
    %511 = arith.mulf %508, %510 : vector<16x16xf32>
    %512 = arith.addf %507, %511 : vector<16x16xf32>
    %513 = vector.extract_strided_slice %497 {offsets = [1, 3], sizes = [16, 16], strides = [1, 1]} : vector<20x20xf32> to vector<16x16xf32>
    %c83_71 = arith.constant 83 : index
    %514 = memref.load %arg1[%c83_71] : memref<101xf32, #tpu.memory_space<smem>>
    %515 = vector.broadcast %514 : f32 to vector<16x16xf32>
    %516 = arith.mulf %513, %515 : vector<16x16xf32>
    %517 = arith.addf %512, %516 : vector<16x16xf32>
    %518 = vector.extract_strided_slice %497 {offsets = [2, 0], sizes = [16, 16], strides = [1, 1]} : vector<20x20xf32> to vector<16x16xf32>
    %c85_72 = arith.constant 85 : index
    %519 = memref.load %arg1[%c85_72] : memref<101xf32, #tpu.memory_space<smem>>
    %520 = vector.broadcast %519 : f32 to vector<16x16xf32>
    %521 = arith.mulf %518, %520 : vector<16x16xf32>
    %522 = arith.addf %517, %521 : vector<16x16xf32>
    %523 = vector.extract_strided_slice %497 {offsets = [2, 1], sizes = [16, 16], strides = [1, 1]} : vector<20x20xf32> to vector<16x16xf32>
    %c86_73 = arith.constant 86 : index
    %524 = memref.load %arg1[%c86_73] : memref<101xf32, #tpu.memory_space<smem>>
    %525 = vector.broadcast %524 : f32 to vector<16x16xf32>
    %526 = arith.mulf %523, %525 : vector<16x16xf32>
    %527 = arith.addf %522, %526 : vector<16x16xf32>
    %528 = vector.extract_strided_slice %497 {offsets = [2, 2], sizes = [16, 16], strides = [1, 1]} : vector<20x20xf32> to vector<16x16xf32>
    %c87_74 = arith.constant 87 : index
    %529 = memref.load %arg1[%c87_74] : memref<101xf32, #tpu.memory_space<smem>>
    %530 = vector.broadcast %529 : f32 to vector<16x16xf32>
    %531 = arith.mulf %528, %530 : vector<16x16xf32>
    %532 = arith.addf %527, %531 : vector<16x16xf32>
    %533 = vector.extract_strided_slice %497 {offsets = [2, 3], sizes = [16, 16], strides = [1, 1]} : vector<20x20xf32> to vector<16x16xf32>
    %c88_75 = arith.constant 88 : index
    %534 = memref.load %arg1[%c88_75] : memref<101xf32, #tpu.memory_space<smem>>
    %535 = vector.broadcast %534 : f32 to vector<16x16xf32>
    %536 = arith.mulf %533, %535 : vector<16x16xf32>
    %537 = arith.addf %532, %536 : vector<16x16xf32>
    %538 = vector.extract_strided_slice %497 {offsets = [2, 4], sizes = [16, 16], strides = [1, 1]} : vector<20x20xf32> to vector<16x16xf32>
    %c89_76 = arith.constant 89 : index
    %539 = memref.load %arg1[%c89_76] : memref<101xf32, #tpu.memory_space<smem>>
    %540 = vector.broadcast %539 : f32 to vector<16x16xf32>
    %541 = arith.mulf %538, %540 : vector<16x16xf32>
    %542 = arith.addf %537, %541 : vector<16x16xf32>
    %543 = vector.extract_strided_slice %497 {offsets = [3, 1], sizes = [16, 16], strides = [1, 1]} : vector<20x20xf32> to vector<16x16xf32>
    %c91_77 = arith.constant 91 : index
    %544 = memref.load %arg1[%c91_77] : memref<101xf32, #tpu.memory_space<smem>>
    %545 = vector.broadcast %544 : f32 to vector<16x16xf32>
    %546 = arith.mulf %543, %545 : vector<16x16xf32>
    %547 = arith.addf %542, %546 : vector<16x16xf32>
    %548 = vector.extract_strided_slice %497 {offsets = [3, 2], sizes = [16, 16], strides = [1, 1]} : vector<20x20xf32> to vector<16x16xf32>
    %c92_78 = arith.constant 92 : index
    %549 = memref.load %arg1[%c92_78] : memref<101xf32, #tpu.memory_space<smem>>
    %550 = vector.broadcast %549 : f32 to vector<16x16xf32>
    %551 = arith.mulf %548, %550 : vector<16x16xf32>
    %552 = arith.addf %547, %551 : vector<16x16xf32>
    %553 = vector.extract_strided_slice %497 {offsets = [3, 3], sizes = [16, 16], strides = [1, 1]} : vector<20x20xf32> to vector<16x16xf32>
    %c93_79 = arith.constant 93 : index
    %554 = memref.load %arg1[%c93_79] : memref<101xf32, #tpu.memory_space<smem>>
    %555 = vector.broadcast %554 : f32 to vector<16x16xf32>
    %556 = arith.mulf %553, %555 : vector<16x16xf32>
    %557 = arith.addf %552, %556 : vector<16x16xf32>
    %558 = vector.extract_strided_slice %497 {offsets = [4, 2], sizes = [16, 16], strides = [1, 1]} : vector<20x20xf32> to vector<16x16xf32>
    %c97_80 = arith.constant 97 : index
    %559 = memref.load %arg1[%c97_80] : memref<101xf32, #tpu.memory_space<smem>>
    %560 = vector.broadcast %559 : f32 to vector<16x16xf32>
    %561 = arith.mulf %558, %560 : vector<16x16xf32>
    %562 = arith.addf %557, %561 : vector<16x16xf32>
    %cst_81 = arith.constant 0.000000e+00 : f32
    %563 = vector.broadcast %cst_81 : f32 to vector<16x16xf32>
    %564 = arith.subf %563, %562 : vector<16x16xf32>
    %565 = math.exp %564 : vector<16x16xf32>
    %cst_82 = arith.constant 1.000000e+00 : f32
    %566 = vector.broadcast %cst_82 : f32 to vector<16x16xf32>
    %567 = arith.addf %566, %565 : vector<16x16xf32>
    %cst_83 = arith.constant 1.000000e+00 : f32
    %568 = vector.broadcast %cst_83 : f32 to vector<16x16xf32>
    %569 = arith.divf %568, %567 : vector<16x16xf32>
    %570 = vector.shape_cast %569 : vector<16x16xf32> to vector<1x16x16xf32>
    %571 = vector.broadcast %570 : vector<1x16x16xf32> to vector<4x16x16xf32>
    %572 = arith.mulf %290, %571 : vector<4x16x16xf32>
    %c1_84 = arith.constant 1 : index
    %c0_85 = arith.constant 0 : index
    %c0_86 = arith.constant 0 : index
    %c0_87 = arith.constant 0 : index
    %573 = vector.load %arg3[%c1_84, %c0_85, %c0_86, %c0_87] : memref<2x4x16x16xf32, #tpu.memory_space<vmem>>, vector<1x4x16x16xf32>
    %574 = vector.shape_cast %573 : vector<1x4x16x16xf32> to vector<4x16x16xf32>
    %575 = vector.shape_cast %572 : vector<4x16x16xf32> to vector<1x4x16x16xf32>
    tpu.vector_store %arg3[%c1_84, %c0_85, %c0_86, %c0_87], %575 {strides = array<i32>} : memref<2x4x16x16xf32, #tpu.memory_space<vmem>>, vector<1x4x16x16xf32>,
    return
  }
  func.func @transform_0(%arg0: i32) -> i32 {
    %c0_i32 = arith.constant 0 : i32
    %c0_i32_0 = arith.constant 0 : i32
    return %c0_i32 : i32
  }
  func.func @transform_1(%arg0: i32) -> (i32, i32, i32, i32) {
    %c0_i32 = arith.constant 0 : i32
    %c0_i32_0 = arith.constant 0 : i32
    %c0_i32_1 = arith.constant 0 : i32
    %c0_i32_2 = arith.constant 0 : i32
    return %arg0, %c0_i32, %c0_i32_0, %c0_i32_1 : i32, i32, i32, i32
  }
  func.func @transform_2(%arg0: i32) -> (i32, i32, i32, i32) {
    %c0_i32 = arith.constant 0 : i32
    %c0_i32_0 = arith.constant 0 : i32
    %c0_i32_1 = arith.constant 0 : i32
    %c0_i32_2 = arith.constant 0 : i32
    return %arg0, %c0_i32, %c0_i32_0, %c0_i32_1 : i32, i32, i32, i32
  }
}

</mosaic_0001>

<llo_original>
// kernel: tpu_custom_call.1
$region0: #{tpu_custom_call.1}
  #allocation0 [shape = 'u32[]', space=smem, size = 0x4, offset = 0x4, fixed_abs, tag = 'smem constant byte address 0x4 - core index']
  #allocation1 [shape = 'u32[72,128]{1,0:T(1,128)}', space=vmem, size = 0x9000, scoped, tag = 'internal scratch']
  #allocation2 [shape = 'f32[4,20,20]{2,1,0:T(8,128)}', space=vmem, size = 0xc000, scoped, tag = 'scratch operand']
  %s0 = inlined_call_operand.hbm [shape: f32[101], index: 0, kind: input, shape index: {}]
  %s1 = inlined_call_operand.hbm [shape: f32[2,4,16,16], index: 1, kind: input, shape index: {}]
  %s2 = inlined_call_operand.hbm [shape: f32[2,4,16,16], index: 2, kind: output, shape index: {}]
  %s3 = sld [smem:[#allocation0]]
  $region26: #{tpu_custom_call.1} parent=0
    _
  %s5 = ssub.s32 1, %s3
  %s6 = scalar_select 0, %s5, %s3
  $region1: #{tpu_custom_call.1} parent=0
    #allocation3 [shape = 'u8[512]{0}', space=smem, size = 0x200, scoped, tag = 'input window, operand 0, single buffered']
    #allocation4 [shape = 's32[1]{0}', space=sflag, size = 0x4, scoped, tag = 'scoped memory for tpu_custom_call.1']
    #allocation5 [shape = 's32[1]{0}', space=sflag, size = 0x4, scoped, tag = 'scoped memory for tpu_custom_call.1']
    #allocation6 [shape = 's32[1]{0}', space=sflag, size = 0x4, scoped, tag = 'scoped memory for tpu_custom_call.1']
    #allocation7 [shape = 'u8[65536]{0}', space=vmem, size = 0x10000, scoped, tag = 'input window, operand 1, single buffered']
    #allocation8 [shape = 'u8[65536]{0}', space=vmem, size = 0x10000, scoped, tag = 'output window, operand 0, single buffered']
    %7 = vsyncpa [#allocation6], 0
    %8 = vsyncpa [#allocation4], 0
    %9 = vsyncpa [#allocation5], 0
    // Predicated region
    $region2: #{tpu_custom_call.1} parent=1 // pred_check
      _
    $region3: #{tpu_custom_call.1} parent=1 // pred_check_branch
      %11 = sbr.rel (0) target = $region5
    $region4: #{tpu_custom_call.1} parent=1 // pred_region
      %13 = vsyncadd [#allocation6], 0
      %s15 = sshll.u32 %s0, 4
      %s16 = int_to_ptr.hbm [resolvable:$true] %s15
      %18 = dma.hbm_to_smem %s16, 16, [#allocation3], [#allocation6]
    $region5: #{tpu_custom_call.1} parent=1 // pred_fallthru
      _
    // Predicated region
    $region6: #{tpu_custom_call.1} parent=1 // pred_check
      _
    $region7: #{tpu_custom_call.1} parent=1 // pred_check_branch
      %20 = sbr.rel (0) target = $region9
    $region8: #{tpu_custom_call.1} parent=1 // pred_region
      %22 = vsyncadd [#allocation4], 0
      %s23 = sshll.u32 %s1, 4
      %s24 = int_to_ptr.hbm [resolvable:$true] %s23
      %s25 = sshll.u32 [#allocation7], 4
      %s26 = int_to_ptr.vmem [resolvable:$true] %s25
      %31 = dma.hbm_to_vmem [thread:$0]  %s24, 2048, %s26, [#allocation4], 128, 128, 8
    $region9: #{tpu_custom_call.1} parent=1 // pred_fallthru
      _
    // Predicated region
    $region10: #{tpu_custom_call.1} parent=1 // pred_check
      _
    $region11: #{tpu_custom_call.1} parent=1 // pred_check_branch
      %33 = sbr.rel (0) target = $region13
    $region12: #{tpu_custom_call.1} parent=1 // pred_region
      %35 = dma.done [#allocation6], 16
    $region13: #{tpu_custom_call.1} parent=1 // pred_fallthru
      _
    // Predicated region
    $region14: #{tpu_custom_call.1} parent=1 // pred_check
      _
    $region15: #{tpu_custom_call.1} parent=1 // pred_check_branch
      %37 = sbr.rel (0) target = $region17
    $region16: #{tpu_custom_call.1} parent=1 // pred_region
      %39 = dma.done [#allocation4], 2048
    $region17: #{tpu_custom_call.1} parent=1 // pred_fallthru
      _
    %40 = sfence
    %vm41 = vcmask 162816
    %42 = vst.msk [vmem:[#allocation2] sm:$0xff] %vm41, 0.0
    %43 = vst.msk [vmem:[#allocation2 + $0x8] sm:$0xff] %vm41, 0.0
    %vm44 = vcmask 158720
    %45 = vst.msk [vmem:[#allocation2 + $0x10] sm:$0xf] %vm44, 0.0
    %46 = vst.msk [vmem:[#allocation2 + $0x18] sm:$0xff] %vm41, 0.0
    %47 = vst.msk [vmem:[#allocation2 + $0x20] sm:$0xff] %vm41, 0.0
    %48 = vst.msk [vmem:[#allocation2 + $0x28] sm:$0xf] %vm44, 0.0
    %49 = vst.msk [vmem:[#allocation2 + $0x30] sm:$0xff] %vm41, 0.0
    %50 = vst.msk [vmem:[#allocation2 + $0x38] sm:$0xff] %vm41, 0.0
    %51 = vst.msk [vmem:[#allocation2 + $0x40] sm:$0xf] %vm44, 0.0
    %52 = vst.msk [vmem:[#allocation2 + $0x48] sm:$0xff] %vm41, 0.0
    %53 = vst.msk [vmem:[#allocation2 + $0x50] sm:$0xff] %vm41, 0.0
    %54 = vst.msk [vmem:[#allocation2 + $0x58] sm:$0xf] %vm44, 0.0
    %v55 = vld [vmem:[#allocation7] sm:$0xff]
    %v56 = vld [vmem:[#allocation7 + $0x8] sm:$0xff]
    %v57 = vld [vmem:[#allocation7 + $0x10] sm:$0xff]
    %v58 = vld [vmem:[#allocation7 + $0x18] sm:$0xff]
    %v59 = vld [vmem:[#allocation7 + $0x20] sm:$0xff]
    %v60 = vld [vmem:[#allocation7 + $0x28] sm:$0xff]
    %v61 = vld [vmem:[#allocation7 + $0x30] sm:$0xff]
    %v62 = vld [vmem:[#allocation7 + $0x38] sm:$0xff]
    %71 = vrot.lane.b32.xlu0 %v55, 2
    %v72 = vpop.permute.xlu0 %71
    %73 = vrot.lane.b32.xlu0 %v56, 2
    %v74 = vpop.permute.xlu0 %73
    %75 = vrot.lane.b32.xlu0 %v57, 2
    %v76 = vpop.permute.xlu0 %75
    %77 = vrot.lane.b32.xlu0 %v58, 2
    %v78 = vpop.permute.xlu0 %77
    %79 = vrot.lane.b32.xlu0 %v59, 2
    %v80 = vpop.permute.xlu0 %79
    %81 = vrot.lane.b32.xlu0 %v60, 2
    %v82 = vpop.permute.xlu0 %81
    %83 = vrot.lane.b32.xlu0 %v61, 2
    %v84 = vpop.permute.xlu0 %83
    %85 = vrot.lane.b32.xlu0 %v62, 2
    %v86 = vpop.permute.xlu0 %85
    %vm95 = vcmask 146448
    %96 = vst.msk [vmem:[#allocation2 + $0x2] sm:$0xff] %vm95, %v72
    %97 = vst.msk [vmem:[#allocation2 + $0xa] sm:$0xff] %vm95, %v74
    %98 = vst.msk [vmem:[#allocation2 + $0x1a] sm:$0xff] %vm95, %v76
    %99 = vst.msk [vmem:[#allocation2 + $0x22] sm:$0xff] %vm95, %v78
    %100 = vst.msk [vmem:[#allocation2 + $0x32] sm:$0xff] %vm95, %v80
    %101 = vst.msk [vmem:[#allocation2 + $0x3a] sm:$0xff] %vm95, %v82
    %102 = vst.msk [vmem:[#allocation2 + $0x4a] sm:$0xff] %vm95, %v84
    %103 = vst.msk [vmem:[#allocation2 + $0x52] sm:$0xff] %vm95, %v86
    %v104 = vld [vmem:[#allocation2] sm:$0xff]
    %v105 = vld [vmem:[#allocation2 + $0x8] sm:$0xff]
    %v106 = vld [vmem:[#allocation2 + $0x10] sm:$0xf]
    %v107 = vld [vmem:[#allocation2 + $0x18] sm:$0xff]
    %v108 = vld [vmem:[#allocation2 + $0x20] sm:$0xff]
    %v109 = vld [vmem:[#allocation2 + $0x28] sm:$0xf]
    %v110 = vld [vmem:[#allocation2 + $0x30] sm:$0xff]
    %v111 = vld [vmem:[#allocation2 + $0x38] sm:$0xff]
    %v112 = vld [vmem:[#allocation2 + $0x40] sm:$0xf]
    %v113 = vld [vmem:[#allocation2 + $0x48] sm:$0xff]
    %v114 = vld [vmem:[#allocation2 + $0x50] sm:$0xff]
    %v115 = vld [vmem:[#allocation2 + $0x58] sm:$0xf]
    %s116 = sld [smem:[#allocation3 + $0x64]]
    %v117 = vstv %s116
    %s118 = sld [smem:[#allocation3 + $0x2]]
    %v119 = vstv %s118
    %v120 = vmul.f32 %v104, %v119
    %v121 = vmul.f32 %v105, %v119
    %v122 = vadd.f32 %v117, %v120
    %v123 = vadd.f32 %v117, %v121
    %s124 = sld [smem:[#allocation3 + $0x6]]
    %v125 = vstv %s124
    %v126 = vmul.f32 %v104, %v125
    %v127 = vmul.f32 %v105, %v125
    %v128 = vmul.f32 %v106, %v125
    %vm132 = vcmask 1046528
    %v133 = vrot.slane %v126, 1
    %v134 = vrot.slane %v127, 1
    %v135 = vsel %vm132, %v133, %v134
    %v136 = vrot.slane %v128, 1
    %v137 = vsel %vm132, %v134, %v136
    %138 = vrot.lane.b32.xlu0 %v135, 1
    %v139 = vpop.permute.xlu0 %138
    %140 = vrot.lane.b32.xlu0 %v137, 1
    %v141 = vpop.permute.xlu0 %140
    %v144 = vadd.f32 %v122, %v139
    %v145 = vadd.f32 %v123, %v141
    %s146 = sld [smem:[#allocation3 + $0x7]]
    %v147 = vstv %s146
    %v148 = vmul.f32 %v104, %v147
    %v149 = vmul.f32 %v105, %v147
    %v150 = vmul.f32 %v106, %v147
    %v154 = vrot.slane %v148, 1
    %v155 = vrot.slane %v149, 1
    %v156 = vsel %vm132, %v154, %v155
    %v157 = vrot.slane %v150, 1
    %v158 = vsel %vm132, %v155, %v157
    %v161 = vadd.f32 %v144, %v156
    %v162 = vadd.f32 %v145, %v158
    %s163 = sld [smem:[#allocation3 + $0x8]]
    %v164 = vstv %s163
    %v165 = vmul.f32 %v104, %v164
    %v166 = vmul.f32 %v105, %v164
    %v167 = vmul.f32 %v106, %v164
    %v171 = vrot.slane %v165, 1
    %v172 = vrot.slane %v166, 1
    %v173 = vsel %vm132, %v171, %v172
    %v174 = vrot.slane %v167, 1
    %v175 = vsel %vm132, %v172, %v174
    %176 = vrot.lane.b32.xlu0 %v173, 127
    %v177 = vpop.permute.xlu0 %176
    %178 = vrot.lane.b32.xlu0 %v175, 127
    %v179 = vpop.permute.xlu0 %178
    %v182 = vadd.f32 %v161, %v177
    %v183 = vadd.f32 %v162, %v179
    %s184 = sld [smem:[#allocation3 + $0xa]]
    %v185 = vstv %s184
    %v186 = vmul.f32 %v104, %v185
    %v187 = vmul.f32 %v105, %v185
    %v188 = vmul.f32 %v106, %v185
    %vm192 = vcmask 1045504
    %v193 = vrot.slane %v186, 2
    %v194 = vrot.slane %v187, 2
    %v195 = vsel %vm192, %v193, %v194
    %v196 = vrot.slane %v188, 2
    %v197 = vsel %vm192, %v194, %v196
    %198 = vrot.lane.b32.xlu0 %v195, 2
    %v199 = vpop.permute.xlu0 %198
    %200 = vrot.lane.b32.xlu0 %v197, 2
    %v201 = vpop.permute.xlu0 %200
    %v204 = vadd.f32 %v182, %v199
    %v205 = vadd.f32 %v183, %v201
    %s206 = sld [smem:[#allocation3 + $0xb]]
    %v207 = vstv %s206
    %v208 = vmul.f32 %v104, %v207
    %v209 = vmul.f32 %v105, %v207
    %v210 = vmul.f32 %v106, %v207
    %v214 = vrot.slane %v208, 2
    %v215 = vrot.slane %v209, 2
    %v216 = vsel %vm192, %v214, %v215
    %v217 = vrot.slane %v210, 2
    %v218 = vsel %vm192, %v215, %v217
    %219 = vrot.lane.b32.xlu0 %v216, 1
    %v220 = vpop.permute.xlu0 %219
    %221 = vrot.lane.b32.xlu0 %v218, 1
    %v222 = vpop.permute.xlu0 %221
    %v225 = vadd.f32 %v204, %v220
    %v226 = vadd.f32 %v205, %v222
    %s227 = sld [smem:[#allocation3 + $0xc]]
    %v228 = vstv %s227
    %v229 = vmul.f32 %v104, %v228
    %v230 = vmul.f32 %v105, %v228
    %v231 = vmul.f32 %v106, %v228
    %v235 = vrot.slane %v229, 2
    %v236 = vrot.slane %v230, 2
    %v237 = vsel %vm192, %v235, %v236
    %v238 = vrot.slane %v231, 2
    %v239 = vsel %vm192, %v236, %v238
    %v242 = vadd.f32 %v225, %v237
    %v243 = vadd.f32 %v226, %v239
    %s244 = sld [smem:[#allocation3 + $0xd]]
    %v245 = vstv %s244
    %v246 = vmul.f32 %v104, %v245
    %v247 = vmul.f32 %v105, %v245
    %v248 = vmul.f32 %v106, %v245
    %v252 = vrot.slane %v246, 2
    %v253 = vrot.slane %v247, 2
    %v254 = vsel %vm192, %v252, %v253
    %v255 = vrot.slane %v248, 2
    %v256 = vsel %vm192, %v253, %v255
    %257 = vrot.lane.b32.xlu0 %v254, 127
    %v258 = vpop.permute.xlu0 %257
    %259 = vrot.lane.b32.xlu0 %v256, 127
    %v260 = vpop.permute.xlu0 %259
    %v263 = vadd.f32 %v242, %v258
    %v264 = vadd.f32 %v243, %v260
    %s265 = sld [smem:[#allocation3 + $0xe]]
    %v266 = vstv %s265
    %v267 = vmul.f32 %v104, %v266
    %v268 = vmul.f32 %v105, %v266
    %v269 = vmul.f32 %v106, %v266
    %v273 = vrot.slane %v267, 2
    %v274 = vrot.slane %v268, 2
    %v275 = vsel %vm192, %v273, %v274
    %v276 = vrot.slane %v269, 2
    %v277 = vsel %vm192, %v274, %v276
    %278 = vrot.lane.b32.xlu0 %v275, 126
    %v279 = vpop.permute.xlu0 %278
    %280 = vrot.lane.b32.xlu0 %v277, 126
    %v281 = vpop.permute.xlu0 %280
    %v284 = vadd.f32 %v263, %v279
    %v285 = vadd.f32 %v264, %v281
    %s286 = sld [smem:[#allocation3 + $0x10]]
    %v287 = vstv %s286
    %v288 = vmul.f32 %v104, %v287
    %v289 = vmul.f32 %v105, %v287
    %v290 = vmul.f32 %v106, %v287
    %vm294 = vcmask 1044480
    %v295 = vrot.slane %v288, 3
    %v296 = vrot.slane %v289, 3
    %v297 = vsel %vm294, %v295, %v296
    %v298 = vrot.slane %v290, 3
    %v299 = vsel %vm294, %v296, %v298
    %300 = vrot.lane.b32.xlu0 %v297, 1
    %v301 = vpop.permute.xlu0 %300
    %302 = vrot.lane.b32.xlu0 %v299, 1
    %v303 = vpop.permute.xlu0 %302
    %v306 = vadd.f32 %v284, %v301
    %v307 = vadd.f32 %v285, %v303
    %s308 = sld [smem:[#allocation3 + $0x11]]
    %v309 = vstv %s308
    %v310 = vmul.f32 %v104, %v309
    %v311 = vmul.f32 %v105, %v309
    %v312 = vmul.f32 %v106, %v309
    %v316 = vrot.slane %v310, 3
    %v317 = vrot.slane %v311, 3
    %v318 = vsel %vm294, %v316, %v317
    %v319 = vrot.slane %v312, 3
    %v320 = vsel %vm294, %v317, %v319
    %v323 = vadd.f32 %v306, %v318
    %v324 = vadd.f32 %v307, %v320
    %s325 = sld [smem:[#allocation3 + $0x12]]
    %v326 = vstv %s325
    %v327 = vmul.f32 %v104, %v326
    %v328 = vmul.f32 %v105, %v326
    %v329 = vmul.f32 %v106, %v326
    %v333 = vrot.slane %v327, 3
    %v334 = vrot.slane %v328, 3
    %v335 = vsel %vm294, %v333, %v334
    %v336 = vrot.slane %v329, 3
    %v337 = vsel %vm294, %v334, %v336
    %338 = vrot.lane.b32.xlu0 %v335, 127
    %v339 = vpop.permute.xlu0 %338
    %340 = vrot.lane.b32.xlu0 %v337, 127
    %v341 = vpop.permute.xlu0 %340
    %v344 = vadd.f32 %v323, %v339
    %v345 = vadd.f32 %v324, %v341
    %s346 = sld [smem:[#allocation3 + $0x16]]
    %v347 = vstv %s346
    %v348 = vmul.f32 %v104, %v347
    %v349 = vmul.f32 %v105, %v347
    %v350 = vmul.f32 %v106, %v347
    %vm354 = vcmask 1043456
    %v355 = vrot.slane %v348, 4
    %v356 = vrot.slane %v349, 4
    %v357 = vsel %vm354, %v355, %v356
    %v358 = vrot.slane %v350, 4
    %v359 = vsel %vm354, %v356, %v358
    %v362 = vadd.f32 %v344, %v357
    %v363 = vadd.f32 %v345, %v359
    %s364 = sld [smem:[#allocation3 + $0x1b]]
    %v365 = vstv %s364
    %v366 = vmul.f32 %v107, %v365
    %v367 = vmul.f32 %v108, %v365
    %v368 = vadd.f32 %v362, %v366
    %v369 = vadd.f32 %v363, %v367
    %s370 = sld [smem:[#allocation3 + $0x1f]]
    %v371 = vstv %s370
    %v372 = vmul.f32 %v107, %v371
    %v373 = vmul.f32 %v108, %v371
    %v374 = vmul.f32 %v109, %v371
    %v378 = vrot.slane %v372, 1
    %v379 = vrot.slane %v373, 1
    %v380 = vsel %vm132, %v378, %v379
    %v381 = vrot.slane %v374, 1
    %v382 = vsel %vm132, %v379, %v381
    %383 = vrot.lane.b32.xlu0 %v380, 1
    %v384 = vpop.permute.xlu0 %383
    %385 = vrot.lane.b32.xlu0 %v382, 1
    %v386 = vpop.permute.xlu0 %385
    %v389 = vadd.f32 %v368, %v384
    %v390 = vadd.f32 %v369, %v386
    %s391 = sld [smem:[#allocation3 + $0x20]]
    %v392 = vstv %s391
    %v393 = vmul.f32 %v107, %v392
    %v394 = vmul.f32 %v108, %v392
    %v395 = vmul.f32 %v109, %v392
    %v399 = vrot.slane %v393, 1
    %v400 = vrot.slane %v394, 1
    %v401 = vsel %vm132, %v399, %v400
    %v402 = vrot.slane %v395, 1
    %v403 = vsel %vm132, %v400, %v402
    %v406 = vadd.f32 %v389, %v401
    %v407 = vadd.f32 %v390, %v403
    %s408 = sld [smem:[#allocation3 + $0x21]]
    %v409 = vstv %s408
    %v410 = vmul.f32 %v107, %v409
    %v411 = vmul.f32 %v108, %v409
    %v412 = vmul.f32 %v109, %v409
    %v416 = vrot.slane %v410, 1
    %v417 = vrot.slane %v411, 1
    %v418 = vsel %vm132, %v416, %v417
    %v419 = vrot.slane %v412, 1
    %v420 = vsel %vm132, %v417, %v419
    %421 = vrot.lane.b32.xlu0 %v418, 127
    %v422 = vpop.permute.xlu0 %421
    %423 = vrot.lane.b32.xlu0 %v420, 127
    %v424 = vpop.permute.xlu0 %423
    %v427 = vadd.f32 %v406, %v422
    %v428 = vadd.f32 %v407, %v424
    %s429 = sld [smem:[#allocation3 + $0x23]]
    %v430 = vstv %s429
    %v431 = vmul.f32 %v107, %v430
    %v432 = vmul.f32 %v108, %v430
    %v433 = vmul.f32 %v109, %v430
    %v437 = vrot.slane %v431, 2
    %v438 = vrot.slane %v432, 2
    %v439 = vsel %vm192, %v437, %v438
    %v440 = vrot.slane %v433, 2
    %v441 = vsel %vm192, %v438, %v440
    %442 = vrot.lane.b32.xlu0 %v439, 2
    %v443 = vpop.permute.xlu0 %442
    %444 = vrot.lane.b32.xlu0 %v441, 2
    %v445 = vpop.permute.xlu0 %444
    %v448 = vadd.f32 %v427, %v443
    %v449 = vadd.f32 %v428, %v445
    %s450 = sld [smem:[#allocation3 + $0x24]]
    %v451 = vstv %s450
    %v452 = vmul.f32 %v107, %v451
    %v453 = vmul.f32 %v108, %v451
    %v454 = vmul.f32 %v109, %v451
    %v458 = vrot.slane %v452, 2
    %v459 = vrot.slane %v453, 2
    %v460 = vsel %vm192, %v458, %v459
    %v461 = vrot.slane %v454, 2
    %v462 = vsel %vm192, %v459, %v461
    %463 = vrot.lane.b32.xlu0 %v460, 1
    %v464 = vpop.permute.xlu0 %463
    %465 = vrot.lane.b32.xlu0 %v462, 1
    %v466 = vpop.permute.xlu0 %465
    %v469 = vadd.f32 %v448, %v464
    %v470 = vadd.f32 %v449, %v466
    %s471 = sld [smem:[#allocation3 + $0x25]]
    %v472 = vstv %s471
    %v473 = vmul.f32 %v107, %v472
    %v474 = vmul.f32 %v108, %v472
    %v475 = vmul.f32 %v109, %v472
    %v479 = vrot.slane %v473, 2
    %v480 = vrot.slane %v474, 2
    %v481 = vsel %vm192, %v479, %v480
    %v482 = vrot.slane %v475, 2
    %v483 = vsel %vm192, %v480, %v482
    %v486 = vadd.f32 %v469, %v481
    %v487 = vadd.f32 %v470, %v483
    %s488 = sld [smem:[#allocation3 + $0x26]]
    %v489 = vstv %s488
    %v490 = vmul.f32 %v107, %v489
    %v491 = vmul.f32 %v108, %v489
    %v492 = vmul.f32 %v109, %v489
    %v496 = vrot.slane %v490, 2
    %v497 = vrot.slane %v491, 2
    %v498 = vsel %vm192, %v496, %v497
    %v499 = vrot.slane %v492, 2
    %v500 = vsel %vm192, %v497, %v499
    %501 = vrot.lane.b32.xlu0 %v498, 127
    %v502 = vpop.permute.xlu0 %501
    %503 = vrot.lane.b32.xlu0 %v500, 127
    %v504 = vpop.permute.xlu0 %503
    %v507 = vadd.f32 %v486, %v502
    %v508 = vadd.f32 %v487, %v504
    %s509 = sld [smem:[#allocation3 + $0x27]]
    %v510 = vstv %s509
    %v511 = vmul.f32 %v107, %v510
    %v512 = vmul.f32 %v108, %v510
    %v513 = vmul.f32 %v109, %v510
    %v517 = vrot.slane %v511, 2
    %v518 = vrot.slane %v512, 2
    %v519 = vsel %vm192, %v517, %v518
    %v520 = vrot.slane %v513, 2
    %v521 = vsel %vm192, %v518, %v520
    %522 = vrot.lane.b32.xlu0 %v519, 126
    %v523 = vpop.permute.xlu0 %522
    %524 = vrot.lane.b32.xlu0 %v521, 126
    %v525 = vpop.permute.xlu0 %524
    %v528 = vadd.f32 %v507, %v523
    %v529 = vadd.f32 %v508, %v525
    %s530 = sld [smem:[#allocation3 + $0x29]]
    %v531 = vstv %s530
    %v532 = vmul.f32 %v107, %v531
    %v533 = vmul.f32 %v108, %v531
    %v534 = vmul.f32 %v109, %v531
    %v538 = vrot.slane %v532, 3
    %v539 = vrot.slane %v533, 3
    %v540 = vsel %vm294, %v538, %v539
    %v541 = vrot.slane %v534, 3
    %v542 = vsel %vm294, %v539, %v541
    %543 = vrot.lane.b32.xlu0 %v540, 1
    %v544 = vpop.permute.xlu0 %543
    %545 = vrot.lane.b32.xlu0 %v542, 1
    %v546 = vpop.permute.xlu0 %545
    %v549 = vadd.f32 %v528, %v544
    %v550 = vadd.f32 %v529, %v546
    %s551 = sld [smem:[#allocation3 + $0x2a]]
    %v552 = vstv %s551
    %v553 = vmul.f32 %v107, %v552
    %v554 = vmul.f32 %v108, %v552
    %v555 = vmul.f32 %v109, %v552
    %v559 = vrot.slane %v553, 3
    %v560 = vrot.slane %v554, 3
    %v561 = vsel %vm294, %v559, %v560
    %v562 = vrot.slane %v555, 3
    %v563 = vsel %vm294, %v560, %v562
    %v566 = vadd.f32 %v549, %v561
    %v567 = vadd.f32 %v550, %v563
    %s568 = sld [smem:[#allocation3 + $0x2b]]
    %v569 = vstv %s568
    %v570 = vmul.f32 %v107, %v569
    %v571 = vmul.f32 %v108, %v569
    %v572 = vmul.f32 %v109, %v569
    %v576 = vrot.slane %v570, 3
    %v577 = vrot.slane %v571, 3
    %v578 = vsel %vm294, %v576, %v577
    %v579 = vrot.slane %v572, 3
    %v580 = vsel %vm294, %v577, %v579
    %581 = vrot.lane.b32.xlu0 %v578, 127
    %v582 = vpop.permute.xlu0 %581
    %583 = vrot.lane.b32.xlu0 %v580, 127
    %v584 = vpop.permute.xlu0 %583
    %v587 = vadd.f32 %v566, %v582
    %v588 = vadd.f32 %v567, %v584
    %s589 = sld [smem:[#allocation3 + $0x2f]]
    %v590 = vstv %s589
    %v591 = vmul.f32 %v107, %v590
    %v592 = vmul.f32 %v108, %v590
    %v593 = vmul.f32 %v109, %v590
    %v597 = vrot.slane %v591, 4
    %v598 = vrot.slane %v592, 4
    %v599 = vsel %vm354, %v597, %v598
    %v600 = vrot.slane %v593, 4
    %v601 = vsel %vm354, %v598, %v600
    %v604 = vadd.f32 %v587, %v599
    %v605 = vadd.f32 %v588, %v601
    %s606 = sld [smem:[#allocation3 + $0x34]]
    %v607 = vstv %s606
    %v608 = vmul.f32 %v110, %v607
    %v609 = vmul.f32 %v111, %v607
    %v610 = vadd.f32 %v604, %v608
    %v611 = vadd.f32 %v605, %v609
    %s612 = sld [smem:[#allocation3 + $0x38]]
    %v613 = vstv %s612
    %v614 = vmul.f32 %v110, %v613
    %v615 = vmul.f32 %v111, %v613
    %v616 = vmul.f32 %v112, %v613
    %v620 = vrot.slane %v614, 1
    %v621 = vrot.slane %v615, 1
    %v622 = vsel %vm132, %v620, %v621
    %v623 = vrot.slane %v616, 1
    %v624 = vsel %vm132, %v621, %v623
    %625 = vrot.lane.b32.xlu0 %v622, 1
    %v626 = vpop.permute.xlu0 %625
    %627 = vrot.lane.b32.xlu0 %v624, 1
    %v628 = vpop.permute.xlu0 %627
    %v631 = vadd.f32 %v610, %v626
    %v632 = vadd.f32 %v611, %v628
    %s633 = sld [smem:[#allocation3 + $0x39]]
    %v634 = vstv %s633
    %v635 = vmul.f32 %v110, %v634
    %v636 = vmul.f32 %v111, %v634
    %v637 = vmul.f32 %v112, %v634
    %v641 = vrot.slane %v635, 1
    %v642 = vrot.slane %v636, 1
    %v643 = vsel %vm132, %v641, %v642
    %v644 = vrot.slane %v637, 1
    %v645 = vsel %vm132, %v642, %v644
    %v648 = vadd.f32 %v631, %v643
    %v649 = vadd.f32 %v632, %v645
    %s650 = sld [smem:[#allocation3 + $0x3a]]
    %v651 = vstv %s650
    %v652 = vmul.f32 %v110, %v651
    %v653 = vmul.f32 %v111, %v651
    %v654 = vmul.f32 %v112, %v651
    %v658 = vrot.slane %v652, 1
    %v659 = vrot.slane %v653, 1
    %v660 = vsel %vm132, %v658, %v659
    %v661 = vrot.slane %v654, 1
    %v662 = vsel %vm132, %v659, %v661
    %663 = vrot.lane.b32.xlu0 %v660, 127
    %v664 = vpop.permute.xlu0 %663
    %665 = vrot.lane.b32.xlu0 %v662, 127
    %v666 = vpop.permute.xlu0 %665
    %v669 = vadd.f32 %v648, %v664
    %v670 = vadd.f32 %v649, %v666
    %s671 = sld [smem:[#allocation3 + $0x3c]]
    %v672 = vstv %s671
    %v673 = vmul.f32 %v110, %v672
    %v674 = vmul.f32 %v111, %v672
    %v675 = vmul.f32 %v112, %v672
    %v679 = vrot.slane %v673, 2
    %v680 = vrot.slane %v674, 2
    %v681 = vsel %vm192, %v679, %v680
    %v682 = vrot.slane %v675, 2
    %v683 = vsel %vm192, %v680, %v682
    %684 = vrot.lane.b32.xlu0 %v681, 2
    %v685 = vpop.permute.xlu0 %684
    %686 = vrot.lane.b32.xlu0 %v683, 2
    %v687 = vpop.permute.xlu0 %686
    %v690 = vadd.f32 %v669, %v685
    %v691 = vadd.f32 %v670, %v687
    %s692 = sld [smem:[#allocation3 + $0x3d]]
    %v693 = vstv %s692
    %v694 = vmul.f32 %v110, %v693
    %v695 = vmul.f32 %v111, %v693
    %v696 = vmul.f32 %v112, %v693
    %v700 = vrot.slane %v694, 2
    %v701 = vrot.slane %v695, 2
    %v702 = vsel %vm192, %v700, %v701
    %v703 = vrot.slane %v696, 2
    %v704 = vsel %vm192, %v701, %v703
    %705 = vrot.lane.b32.xlu0 %v702, 1
    %v706 = vpop.permute.xlu0 %705
    %707 = vrot.lane.b32.xlu0 %v704, 1
    %v708 = vpop.permute.xlu0 %707
    %v711 = vadd.f32 %v690, %v706
    %v712 = vadd.f32 %v691, %v708
    %s713 = sld [smem:[#allocation3 + $0x3e]]
    %v714 = vstv %s713
    %v715 = vmul.f32 %v110, %v714
    %v716 = vmul.f32 %v111, %v714
    %v717 = vmul.f32 %v112, %v714
    %v721 = vrot.slane %v715, 2
    %v722 = vrot.slane %v716, 2
    %v723 = vsel %vm192, %v721, %v722
    %v724 = vrot.slane %v717, 2
    %v725 = vsel %vm192, %v722, %v724
    %v728 = vadd.f32 %v711, %v723
    %v729 = vadd.f32 %v712, %v725
    %s730 = sld [smem:[#allocation3 + $0x3f]]
    %v731 = vstv %s730
    %v732 = vmul.f32 %v110, %v731
    %v733 = vmul.f32 %v111, %v731
    %v734 = vmul.f32 %v112, %v731
    %v738 = vrot.slane %v732, 2
    %v739 = vrot.slane %v733, 2
    %v740 = vsel %vm192, %v738, %v739
    %v741 = vrot.slane %v734, 2
    %v742 = vsel %vm192, %v739, %v741
    %743 = vrot.lane.b32.xlu0 %v740, 127
    %v744 = vpop.permute.xlu0 %743
    %745 = vrot.lane.b32.xlu0 %v742, 127
    %v746 = vpop.permute.xlu0 %745
    %v749 = vadd.f32 %v728, %v744
    %v750 = vadd.f32 %v729, %v746
    %s751 = sld [smem:[#allocation3 + $0x40]]
    %v752 = vstv %s751
    %v753 = vmul.f32 %v110, %v752
    %v754 = vmul.f32 %v111, %v752
    %v755 = vmul.f32 %v112, %v752
    %v759 = vrot.slane %v753, 2
    %v760 = vrot.slane %v754, 2
    %v761 = vsel %vm192, %v759, %v760
    %v762 = vrot.slane %v755, 2
    %v763 = vsel %vm192, %v760, %v762
    %764 = vrot.lane.b32.xlu0 %v761, 126
    %v765 = vpop.permute.xlu0 %764
    %766 = vrot.lane.b32.xlu0 %v763, 126
    %v767 = vpop.permute.xlu0 %766
    %v770 = vadd.f32 %v749, %v765
    %v771 = vadd.f32 %v750, %v767
    %s772 = sld [smem:[#allocation3 + $0x42]]
    %v773 = vstv %s772
    %v774 = vmul.f32 %v110, %v773
    %v775 = vmul.f32 %v111, %v773
    %v776 = vmul.f32 %v112, %v773
    %v780 = vrot.slane %v774, 3
    %v781 = vrot.slane %v775, 3
    %v782 = vsel %vm294, %v780, %v781
    %v783 = vrot.slane %v776, 3
    %v784 = vsel %vm294, %v781, %v783
    %785 = vrot.lane.b32.xlu0 %v782, 1
    %v786 = vpop.permute.xlu0 %785
    %787 = vrot.lane.b32.xlu0 %v784, 1
    %v788 = vpop.permute.xlu0 %787
    %v791 = vadd.f32 %v770, %v786
    %v792 = vadd.f32 %v771, %v788
    %s793 = sld [smem:[#allocation3 + $0x43]]
    %v794 = vstv %s793
    %v795 = vmul.f32 %v110, %v794
    %v796 = vmul.f32 %v111, %v794
    %v797 = vmul.f32 %v112, %v794
    %v801 = vrot.slane %v795, 3
    %v802 = vrot.slane %v796, 3
    %v803 = vsel %vm294, %v801, %v802
    %v804 = vrot.slane %v797, 3
    %v805 = vsel %vm294, %v802, %v804
    %v808 = vadd.f32 %v791, %v803
    %v809 = vadd.f32 %v792, %v805
    %s810 = sld [smem:[#allocation3 + $0x44]]
    %v811 = vstv %s810
    %v812 = vmul.f32 %v110, %v811
    %v813 = vmul.f32 %v111, %v811
    %v814 = vmul.f32 %v112, %v811
    %v818 = vrot.slane %v812, 3
    %v819 = vrot.slane %v813, 3
    %v820 = vsel %vm294, %v818, %v819
    %v821 = vrot.slane %v814, 3
    %v822 = vsel %vm294, %v819, %v821
    %823 = vrot.lane.b32.xlu0 %v820, 127
    %v824 = vpop.permute.xlu0 %823
    %825 = vrot.lane.b32.xlu0 %v822, 127
    %v826 = vpop.permute.xlu0 %825
    %v829 = vadd.f32 %v808, %v824
    %v830 = vadd.f32 %v809, %v826
    %s831 = sld [smem:[#allocation3 + $0x48]]
    %v832 = vstv %s831
    %v833 = vmul.f32 %v110, %v832
    %v834 = vmul.f32 %v111, %v832
    %v835 = vmul.f32 %v112, %v832
    %v839 = vrot.slane %v833, 4
    %v840 = vrot.slane %v834, 4
    %v841 = vsel %vm354, %v839, %v840
    %v842 = vrot.slane %v835, 4
    %v843 = vsel %vm354, %v840, %v842
    %v846 = vadd.f32 %v829, %v841
    %v847 = vadd.f32 %v830, %v843
    %s848 = sld [smem:[#allocation3 + $0x4d]]
    %v849 = vstv %s848
    %v850 = vmul.f32 %v113, %v849
    %v851 = vmul.f32 %v114, %v849
    %v852 = vadd.f32 %v846, %v850
    %v853 = vadd.f32 %v847, %v851
    %s854 = sld [smem:[#allocation3 + $0x51]]
    %v855 = vstv %s854
    %v856 = vmul.f32 %v113, %v855
    %v857 = vmul.f32 %v114, %v855
    %v858 = vmul.f32 %v115, %v855
    %v862 = vrot.slane %v856, 1
    %v863 = vrot.slane %v857, 1
    %v864 = vsel %vm132, %v862, %v863
    %v865 = vrot.slane %v858, 1
    %v866 = vsel %vm132, %v863, %v865
    %867 = vrot.lane.b32.xlu0 %v864, 1
    %v868 = vpop.permute.xlu0 %867
    %869 = vrot.lane.b32.xlu0 %v866, 1
    %v870 = vpop.permute.xlu0 %869
    %v873 = vadd.f32 %v852, %v868
    %v874 = vadd.f32 %v853, %v870
    %s875 = sld [smem:[#allocation3 + $0x52]]
    %v876 = vstv %s875
    %v877 = vmul.f32 %v113, %v876
    %v878 = vmul.f32 %v114, %v876
    %v879 = vmul.f32 %v115, %v876
    %v883 = vrot.slane %v877, 1
    %v884 = vrot.slane %v878, 1
    %v885 = vsel %vm132, %v883, %v884
    %v886 = vrot.slane %v879, 1
    %v887 = vsel %vm132, %v884, %v886
    %v890 = vadd.f32 %v873, %v885
    %v891 = vadd.f32 %v874, %v887
    %s892 = sld [smem:[#allocation3 + $0x53]]
    %v893 = vstv %s892
    %v894 = vmul.f32 %v113, %v893
    %v895 = vmul.f32 %v114, %v893
    %v896 = vmul.f32 %v115, %v893
    %v900 = vrot.slane %v894, 1
    %v901 = vrot.slane %v895, 1
    %v902 = vsel %vm132, %v900, %v901
    %v903 = vrot.slane %v896, 1
    %v904 = vsel %vm132, %v901, %v903
    %905 = vrot.lane.b32.xlu0 %v902, 127
    %v906 = vpop.permute.xlu0 %905
    %907 = vrot.lane.b32.xlu0 %v904, 127
    %v908 = vpop.permute.xlu0 %907
    %v911 = vadd.f32 %v890, %v906
    %v912 = vadd.f32 %v891, %v908
    %s913 = sld [smem:[#allocation3 + $0x55]]
    %v914 = vstv %s913
    %v915 = vmul.f32 %v113, %v914
    %v916 = vmul.f32 %v114, %v914
    %v917 = vmul.f32 %v115, %v914
    %v921 = vrot.slane %v915, 2
    %v922 = vrot.slane %v916, 2
    %v923 = vsel %vm192, %v921, %v922
    %v924 = vrot.slane %v917, 2
    %v925 = vsel %vm192, %v922, %v924
    %926 = vrot.lane.b32.xlu0 %v923, 2
    %v927 = vpop.permute.xlu0 %926
    %928 = vrot.lane.b32.xlu0 %v925, 2
    %v929 = vpop.permute.xlu0 %928
    %v932 = vadd.f32 %v911, %v927
    %v933 = vadd.f32 %v912, %v929
    %s934 = sld [smem:[#allocation3 + $0x56]]
    %v935 = vstv %s934
    %v936 = vmul.f32 %v113, %v935
    %v937 = vmul.f32 %v114, %v935
    %v938 = vmul.f32 %v115, %v935
    %v942 = vrot.slane %v936, 2
    %v943 = vrot.slane %v937, 2
    %v944 = vsel %vm192, %v942, %v943
    %v945 = vrot.slane %v938, 2
    %v946 = vsel %vm192, %v943, %v945
    %947 = vrot.lane.b32.xlu0 %v944, 1
    %v948 = vpop.permute.xlu0 %947
    %949 = vrot.lane.b32.xlu0 %v946, 1
    %v950 = vpop.permute.xlu0 %949
    %v953 = vadd.f32 %v932, %v948
    %v954 = vadd.f32 %v933, %v950
    %s955 = sld [smem:[#allocation3 + $0x57]]
    %v956 = vstv %s955
    %v957 = vmul.f32 %v113, %v956
    %v958 = vmul.f32 %v114, %v956
    %v959 = vmul.f32 %v115, %v956
    %v963 = vrot.slane %v957, 2
    %v964 = vrot.slane %v958, 2
    %v965 = vsel %vm192, %v963, %v964
    %v966 = vrot.slane %v959, 2
    %v967 = vsel %vm192, %v964, %v966
    %v970 = vadd.f32 %v953, %v965
    %v971 = vadd.f32 %v954, %v967
    %s972 = sld [smem:[#allocation3 + $0x58]]
    %v973 = vstv %s972
    %v974 = vmul.f32 %v113, %v973
    %v975 = vmul.f32 %v114, %v973
    %v976 = vmul.f32 %v115, %v973
    %v980 = vrot.slane %v974, 2
    %v981 = vrot.slane %v975, 2
    %v982 = vsel %vm192, %v980, %v981
    %v983 = vrot.slane %v976, 2
    %v984 = vsel %vm192, %v981, %v983
    %985 = vrot.lane.b32.xlu0 %v982, 127
    %v986 = vpop.permute.xlu0 %985
    %987 = vrot.lane.b32.xlu0 %v984, 127
    %v988 = vpop.permute.xlu0 %987
    %v991 = vadd.f32 %v970, %v986
    %v992 = vadd.f32 %v971, %v988
    %s993 = sld [smem:[#allocation3 + $0x59]]
    %v994 = vstv %s993
    %v995 = vmul.f32 %v113, %v994
    %v996 = vmul.f32 %v114, %v994
    %v997 = vmul.f32 %v115, %v994
    %v1001 = vrot.slane %v995, 2
    %v1002 = vrot.slane %v996, 2
    %v1003 = vsel %vm192, %v1001, %v1002
    %v1004 = vrot.slane %v997, 2
    %v1005 = vsel %vm192, %v1002, %v1004
    %1006 = vrot.lane.b32.xlu0 %v1003, 126
    %v1007 = vpop.permute.xlu0 %1006
    %1008 = vrot.lane.b32.xlu0 %v1005, 126
    %v1009 = vpop.permute.xlu0 %1008
    %v1012 = vadd.f32 %v991, %v1007
    %v1013 = vadd.f32 %v992, %v1009
    %s1014 = sld [smem:[#allocation3 + $0x5b]]
    %v1015 = vstv %s1014
    %v1016 = vmul.f32 %v113, %v1015
    %v1017 = vmul.f32 %v114, %v1015
    %v1018 = vmul.f32 %v115, %v1015
    %v1022 = vrot.slane %v1016, 3
    %v1023 = vrot.slane %v1017, 3
    %v1024 = vsel %vm294, %v1022, %v1023
    %v1025 = vrot.slane %v1018, 3
    %v1026 = vsel %vm294, %v1023, %v1025
    %1027 = vrot.lane.b32.xlu0 %v1024, 1
    %v1028 = vpop.permute.xlu0 %1027
    %1029 = vrot.lane.b32.xlu0 %v1026, 1
    %v1030 = vpop.permute.xlu0 %1029
    %v1033 = vadd.f32 %v1012, %v1028
    %v1034 = vadd.f32 %v1013, %v1030
    %s1035 = sld [smem:[#allocation3 + $0x5c]]
    %v1036 = vstv %s1035
    %v1037 = vmul.f32 %v113, %v1036
    %v1038 = vmul.f32 %v114, %v1036
    %v1039 = vmul.f32 %v115, %v1036
    %v1043 = vrot.slane %v1037, 3
    %v1044 = vrot.slane %v1038, 3
    %v1045 = vsel %vm294, %v1043, %v1044
    %v1046 = vrot.slane %v1039, 3
    %v1047 = vsel %vm294, %v1044, %v1046
    %v1050 = vadd.f32 %v1033, %v1045
    %v1051 = vadd.f32 %v1034, %v1047
    %s1052 = sld [smem:[#allocation3 + $0x5d]]
    %v1053 = vstv %s1052
    %v1054 = vmul.f32 %v113, %v1053
    %v1055 = vmul.f32 %v114, %v1053
    %v1056 = vmul.f32 %v115, %v1053
    %v1060 = vrot.slane %v1054, 3
    %v1061 = vrot.slane %v1055, 3
    %v1062 = vsel %vm294, %v1060, %v1061
    %v1063 = vrot.slane %v1056, 3
    %v1064 = vsel %vm294, %v1061, %v1063
    %1065 = vrot.lane.b32.xlu0 %v1062, 127
    %v1066 = vpop.permute.xlu0 %1065
    %1067 = vrot.lane.b32.xlu0 %v1064, 127
    %v1068 = vpop.permute.xlu0 %1067
    %v1071 = vadd.f32 %v1050, %v1066
    %v1072 = vadd.f32 %v1051, %v1068
    %s1073 = sld [smem:[#allocation3 + $0x61]]
    %v1074 = vstv %s1073
    %v1075 = vmul.f32 %v113, %v1074
    %v1076 = vmul.f32 %v114, %v1074
    %v1077 = vmul.f32 %v115, %v1074
    %v1081 = vrot.slane %v1075, 4
    %v1082 = vrot.slane %v1076, 4
    %v1083 = vsel %vm354, %v1081, %v1082
    %v1084 = vrot.slane %v1077, 4
    %v1085 = vsel %vm354, %v1082, %v1084
    %v1088 = vadd.f32 %v1071, %v1083
    %v1089 = vadd.f32 %v1072, %v1085
    %v1090 = vsub.f32 0.0, %v1088
    %v1091 = vsub.f32 0.0, %v1089
    %v1092 = vmul.f32 %v1090, 1.442695
    %v1093 = vpow.pop %v1092
    %v1094 = vmul.f32 %v1091, 1.442695
    %v1095 = vpow.pop %v1094
    %v1096 = vadd.f32 %v1093, 1.0
    %v1097 = vadd.f32 %v1095, 1.0
    %v1098 = vrcp.pop %v1096
    %v1099 = vmul.f32 %v1096, %v1098
    %v1100 = vsub.f32 1.0, %v1099
    %v1101 = vmul.f32 %v1098, %v1100
    %v1102 = vadd.f32 %v1098, %v1101
    %vm1103 = vweird.f32 %v1096
    %vm1104 = vweird.f32 %v1098
    %vm1105 = vmor %vm1103, %vm1104
    %v1106 = vsel %vm1105, %v1098, %v1102
    %v1107 = vand.u32 2147483647, %v1096
    %vm1108 = vcmp.eq.f32.partialorder %v1107, 8.507059e+37
    %v1109 = vand.u32 %v1096, 2147483648
    %v1110 = vor.u32 1.1754944e-38, %v1109
    %v1111 = vsel %vm1108, %v1110, %v1106
    %v1112 = vmul.f32 1.0, %v1111
    %v1113 = vrcp.pop %v1097
    %v1114 = vmul.f32 %v1097, %v1113
    %v1115 = vsub.f32 1.0, %v1114
    %v1116 = vmul.f32 %v1113, %v1115
    %v1117 = vadd.f32 %v1113, %v1116
    %vm1118 = vweird.f32 %v1097
    %vm1119 = vweird.f32 %v1113
    %vm1120 = vmor %vm1118, %vm1119
    %v1121 = vsel %vm1120, %v1113, %v1117
    %v1122 = vand.u32 2147483647, %v1097
    %vm1123 = vcmp.eq.f32.partialorder %v1122, 8.507059e+37
    %v1124 = vand.u32 %v1097, 2147483648
    %v1125 = vor.u32 1.1754944e-38, %v1124
    %v1126 = vsel %vm1123, %v1125, %v1121
    %v1127 = vmul.f32 1.0, %v1126
    %1130 = vrot.lane.b32.xlu0 %v1112, 126
    %v1131 = vpop.permute.xlu0 %1130
    %1132 = vrot.lane.b32.xlu0 %v1127, 126
    %v1133 = vpop.permute.xlu0 %1132
    %v1136 = vmul.f32 %v55, %v1131
    %v1137 = vmul.f32 %v56, %v1133
    %v1138 = vmul.f32 %v57, %v1131
    %v1139 = vmul.f32 %v58, %v1133
    %v1140 = vmul.f32 %v59, %v1131
    %v1141 = vmul.f32 %v60, %v1133
    %v1142 = vmul.f32 %v61, %v1131
    %v1143 = vmul.f32 %v62, %v1133
    %vm1144 = vcmask 130048
    %1145 = vst.msk [vmem:[#allocation8] sm:$0xff] %vm1144, %v1136
    %1146 = vst.msk [vmem:[#allocation8 + $0x8] sm:$0xff] %vm1144, %v1137
    %1147 = vst.msk [vmem:[#allocation8 + $0x10] sm:$0xff] %vm1144, %v1138
    %1148 = vst.msk [vmem:[#allocation8 + $0x18] sm:$0xff] %vm1144, %v1139
    %1149 = vst.msk [vmem:[#allocation8 + $0x20] sm:$0xff] %vm1144, %v1140
    %1150 = vst.msk [vmem:[#allocation8 + $0x28] sm:$0xff] %vm1144, %v1141
    %1151 = vst.msk [vmem:[#allocation8 + $0x30] sm:$0xff] %vm1144, %v1142
    %1152 = vst.msk [vmem:[#allocation8 + $0x38] sm:$0xff] %vm1144, %v1143
    %s1153 = scalar_lea.vmem [#allocation7], 64
    %v1154 = vld [vmem:[%s1153] sm:$0xff]
    %v1155 = vld [vmem:[%s1153 + $0x8] sm:$0xff]
    %v1156 = vld [vmem:[%s1153 + $0x10] sm:$0xff]
    %v1157 = vld [vmem:[%s1153 + $0x18] sm:$0xff]
    %v1158 = vld [vmem:[%s1153 + $0x20] sm:$0xff]
    %v1159 = vld [vmem:[%s1153 + $0x28] sm:$0xff]
    %v1160 = vld [vmem:[%s1153 + $0x30] sm:$0xff]
    %v1161 = vld [vmem:[%s1153 + $0x38] sm:$0xff]
    %1170 = vrot.lane.b32.xlu0 %v1154, 2
    %v1171 = vpop.permute.xlu0 %1170
    %1172 = vrot.lane.b32.xlu0 %v1155, 2
    %v1173 = vpop.permute.xlu0 %1172
    %1174 = vrot.lane.b32.xlu0 %v1156, 2
    %v1175 = vpop.permute.xlu0 %1174
    %1176 = vrot.lane.b32.xlu0 %v1157, 2
    %v1177 = vpop.permute.xlu0 %1176
    %1178 = vrot.lane.b32.xlu0 %v1158, 2
    %v1179 = vpop.permute.xlu0 %1178
    %1180 = vrot.lane.b32.xlu0 %v1159, 2
    %v1181 = vpop.permute.xlu0 %1180
    %1182 = vrot.lane.b32.xlu0 %v1160, 2
    %v1183 = vpop.permute.xlu0 %1182
    %1184 = vrot.lane.b32.xlu0 %v1161, 2
    %v1185 = vpop.permute.xlu0 %1184
    %1194 = vst.msk [vmem:[#allocation2 + $0x2] sm:$0xff] %vm95, %v1171
    %1195 = vst.msk [vmem:[#allocation2 + $0xa] sm:$0xff] %vm95, %v1173
    %1196 = vst.msk [vmem:[#allocation2 + $0x1a] sm:$0xff] %vm95, %v1175
    %1197 = vst.msk [vmem:[#allocation2 + $0x22] sm:$0xff] %vm95, %v1177
    %1198 = vst.msk [vmem:[#allocation2 + $0x32] sm:$0xff] %vm95, %v1179
    %1199 = vst.msk [vmem:[#allocation2 + $0x3a] sm:$0xff] %vm95, %v1181
    %1200 = vst.msk [vmem:[#allocation2 + $0x4a] sm:$0xff] %vm95, %v1183
    %1201 = vst.msk [vmem:[#allocation2 + $0x52] sm:$0xff] %vm95, %v1185
    %v1202 = vld [vmem:[#allocation2] sm:$0xff]
    %v1203 = vld [vmem:[#allocation2 + $0x8] sm:$0xff]
    %v1204 = vld [vmem:[#allocation2 + $0x10] sm:$0xf]
    %v1205 = vld [vmem:[#allocation2 + $0x18] sm:$0xff]
    %v1206 = vld [vmem:[#allocation2 + $0x20] sm:$0xff]
    %v1207 = vld [vmem:[#allocation2 + $0x28] sm:$0xf]
    %v1208 = vld [vmem:[#allocation2 + $0x30] sm:$0xff]
    %v1209 = vld [vmem:[#allocation2 + $0x38] sm:$0xff]
    %v1210 = vld [vmem:[#allocation2 + $0x40] sm:$0xf]
    %v1211 = vld [vmem:[#allocation2 + $0x48] sm:$0xff]
    %v1212 = vld [vmem:[#allocation2 + $0x50] sm:$0xff]
    %v1213 = vld [vmem:[#allocation2 + $0x58] sm:$0xf]
    %s1214 = sld [smem:[#allocation3 + $0x64]]
    %v1215 = vstv %s1214
    %s1216 = sld [smem:[#allocation3 + $0x2]]
    %v1217 = vstv %s1216
    %v1218 = vmul.f32 %v1202, %v1217
    %v1219 = vmul.f32 %v1203, %v1217
    %v1220 = vadd.f32 %v1215, %v1218
    %v1221 = vadd.f32 %v1215, %v1219
    %s1222 = sld [smem:[#allocation3 + $0x6]]
    %v1223 = vstv %s1222
    %v1224 = vmul.f32 %v1202, %v1223
    %v1225 = vmul.f32 %v1203, %v1223
    %v1226 = vmul.f32 %v1204, %v1223
    %v1230 = vrot.slane %v1224, 1
    %v1231 = vrot.slane %v1225, 1
    %v1232 = vsel %vm132, %v1230, %v1231
    %v1233 = vrot.slane %v1226, 1
    %v1234 = vsel %vm132, %v1231, %v1233
    %1235 = vrot.lane.b32.xlu0 %v1232, 1
    %v1236 = vpop.permute.xlu0 %1235
    %1237 = vrot.lane.b32.xlu0 %v1234, 1
    %v1238 = vpop.permute.xlu0 %1237
    %v1241 = vadd.f32 %v1220, %v1236
    %v1242 = vadd.f32 %v1221, %v1238
    %s1243 = sld [smem:[#allocation3 + $0x7]]
    %v1244 = vstv %s1243
    %v1245 = vmul.f32 %v1202, %v1244
    %v1246 = vmul.f32 %v1203, %v1244
    %v1247 = vmul.f32 %v1204, %v1244
    %v1251 = vrot.slane %v1245, 1
    %v1252 = vrot.slane %v1246, 1
    %v1253 = vsel %vm132, %v1251, %v1252
    %v1254 = vrot.slane %v1247, 1
    %v1255 = vsel %vm132, %v1252, %v1254
    %v1258 = vadd.f32 %v1241, %v1253
    %v1259 = vadd.f32 %v1242, %v1255
    %s1260 = sld [smem:[#allocation3 + $0x8]]
    %v1261 = vstv %s1260
    %v1262 = vmul.f32 %v1202, %v1261
    %v1263 = vmul.f32 %v1203, %v1261
    %v1264 = vmul.f32 %v1204, %v1261
    %v1268 = vrot.slane %v1262, 1
    %v1269 = vrot.slane %v1263, 1
    %v1270 = vsel %vm132, %v1268, %v1269
    %v1271 = vrot.slane %v1264, 1
    %v1272 = vsel %vm132, %v1269, %v1271
    %1273 = vrot.lane.b32.xlu0 %v1270, 127
    %v1274 = vpop.permute.xlu0 %1273
    %1275 = vrot.lane.b32.xlu0 %v1272, 127
    %v1276 = vpop.permute.xlu0 %1275
    %v1279 = vadd.f32 %v1258, %v1274
    %v1280 = vadd.f32 %v1259, %v1276
    %s1281 = sld [smem:[#allocation3 + $0xa]]
    %v1282 = vstv %s1281
    %v1283 = vmul.f32 %v1202, %v1282
    %v1284 = vmul.f32 %v1203, %v1282
    %v1285 = vmul.f32 %v1204, %v1282
    %v1289 = vrot.slane %v1283, 2
    %v1290 = vrot.slane %v1284, 2
    %v1291 = vsel %vm192, %v1289, %v1290
    %v1292 = vrot.slane %v1285, 2
    %v1293 = vsel %vm192, %v1290, %v1292
    %1294 = vrot.lane.b32.xlu0 %v1291, 2
    %v1295 = vpop.permute.xlu0 %1294
    %1296 = vrot.lane.b32.xlu0 %v1293, 2
    %v1297 = vpop.permute.xlu0 %1296
    %v1300 = vadd.f32 %v1279, %v1295
    %v1301 = vadd.f32 %v1280, %v1297
    %s1302 = sld [smem:[#allocation3 + $0xb]]
    %v1303 = vstv %s1302
    %v1304 = vmul.f32 %v1202, %v1303
    %v1305 = vmul.f32 %v1203, %v1303
    %v1306 = vmul.f32 %v1204, %v1303
    %v1310 = vrot.slane %v1304, 2
    %v1311 = vrot.slane %v1305, 2
    %v1312 = vsel %vm192, %v1310, %v1311
    %v1313 = vrot.slane %v1306, 2
    %v1314 = vsel %vm192, %v1311, %v1313
    %1315 = vrot.lane.b32.xlu0 %v1312, 1
    %v1316 = vpop.permute.xlu0 %1315
    %1317 = vrot.lane.b32.xlu0 %v1314, 1
    %v1318 = vpop.permute.xlu0 %1317
    %v1321 = vadd.f32 %v1300, %v1316
    %v1322 = vadd.f32 %v1301, %v1318
    %s1323 = sld [smem:[#allocation3 + $0xc]]
    %v1324 = vstv %s1323
    %v1325 = vmul.f32 %v1202, %v1324
    %v1326 = vmul.f32 %v1203, %v1324
    %v1327 = vmul.f32 %v1204, %v1324
    %v1331 = vrot.slane %v1325, 2
    %v1332 = vrot.slane %v1326, 2
    %v1333 = vsel %vm192, %v1331, %v1332
    %v1334 = vrot.slane %v1327, 2
    %v1335 = vsel %vm192, %v1332, %v1334
    %v1338 = vadd.f32 %v1321, %v1333
    %v1339 = vadd.f32 %v1322, %v1335
    %s1340 = sld [smem:[#allocation3 + $0xd]]
    %v1341 = vstv %s1340
    %v1342 = vmul.f32 %v1202, %v1341
    %v1343 = vmul.f32 %v1203, %v1341
    %v1344 = vmul.f32 %v1204, %v1341
    %v1348 = vrot.slane %v1342, 2
    %v1349 = vrot.slane %v1343, 2
    %v1350 = vsel %vm192, %v1348, %v1349
    %v1351 = vrot.slane %v1344, 2
    %v1352 = vsel %vm192, %v1349, %v1351
    %1353 = vrot.lane.b32.xlu0 %v1350, 127
    %v1354 = vpop.permute.xlu0 %1353
    %1355 = vrot.lane.b32.xlu0 %v1352, 127
    %v1356 = vpop.permute.xlu0 %1355
    %v1359 = vadd.f32 %v1338, %v1354
    %v1360 = vadd.f32 %v1339, %v1356
    %s1361 = sld [smem:[#allocation3 + $0xe]]
    %v1362 = vstv %s1361
    %v1363 = vmul.f32 %v1202, %v1362
    %v1364 = vmul.f32 %v1203, %v1362
    %v1365 = vmul.f32 %v1204, %v1362
    %v1369 = vrot.slane %v1363, 2
    %v1370 = vrot.slane %v1364, 2
    %v1371 = vsel %vm192, %v1369, %v1370
    %v1372 = vrot.slane %v1365, 2
    %v1373 = vsel %vm192, %v1370, %v1372
    %1374 = vrot.lane.b32.xlu0 %v1371, 126
    %v1375 = vpop.permute.xlu0 %1374
    %1376 = vrot.lane.b32.xlu0 %v1373, 126
    %v1377 = vpop.permute.xlu0 %1376
    %v1380 = vadd.f32 %v1359, %v1375
    %v1381 = vadd.f32 %v1360, %v1377
    %s1382 = sld [smem:[#allocation3 + $0x10]]
    %v1383 = vstv %s1382
    %v1384 = vmul.f32 %v1202, %v1383
    %v1385 = vmul.f32 %v1203, %v1383
    %v1386 = vmul.f32 %v1204, %v1383
    %v1390 = vrot.slane %v1384, 3
    %v1391 = vrot.slane %v1385, 3
    %v1392 = vsel %vm294, %v1390, %v1391
    %v1393 = vrot.slane %v1386, 3
    %v1394 = vsel %vm294, %v1391, %v1393
    %1395 = vrot.lane.b32.xlu0 %v1392, 1
    %v1396 = vpop.permute.xlu0 %1395
    %1397 = vrot.lane.b32.xlu0 %v1394, 1
    %v1398 = vpop.permute.xlu0 %1397
    %v1401 = vadd.f32 %v1380, %v1396
    %v1402 = vadd.f32 %v1381, %v1398
    %s1403 = sld [smem:[#allocation3 + $0x11]]
    %v1404 = vstv %s1403
    %v1405 = vmul.f32 %v1202, %v1404
    %v1406 = vmul.f32 %v1203, %v1404
    %v1407 = vmul.f32 %v1204, %v1404
    %v1411 = vrot.slane %v1405, 3
    %v1412 = vrot.slane %v1406, 3
    %v1413 = vsel %vm294, %v1411, %v1412
    %v1414 = vrot.slane %v1407, 3
    %v1415 = vsel %vm294, %v1412, %v1414
    %v1418 = vadd.f32 %v1401, %v1413
    %v1419 = vadd.f32 %v1402, %v1415
    %s1420 = sld [smem:[#allocation3 + $0x12]]
    %v1421 = vstv %s1420
    %v1422 = vmul.f32 %v1202, %v1421
    %v1423 = vmul.f32 %v1203, %v1421
    %v1424 = vmul.f32 %v1204, %v1421
    %v1428 = vrot.slane %v1422, 3
    %v1429 = vrot.slane %v1423, 3
    %v1430 = vsel %vm294, %v1428, %v1429
    %v1431 = vrot.slane %v1424, 3
    %v1432 = vsel %vm294, %v1429, %v1431
    %1433 = vrot.lane.b32.xlu0 %v1430, 127
    %v1434 = vpop.permute.xlu0 %1433
    %1435 = vrot.lane.b32.xlu0 %v1432, 127
    %v1436 = vpop.permute.xlu0 %1435
    %v1439 = vadd.f32 %v1418, %v1434
    %v1440 = vadd.f32 %v1419, %v1436
    %s1441 = sld [smem:[#allocation3 + $0x16]]
    %v1442 = vstv %s1441
    %v1443 = vmul.f32 %v1202, %v1442
    %v1444 = vmul.f32 %v1203, %v1442
    %v1445 = vmul.f32 %v1204, %v1442
    %v1449 = vrot.slane %v1443, 4
    %v1450 = vrot.slane %v1444, 4
    %v1451 = vsel %vm354, %v1449, %v1450
    %v1452 = vrot.slane %v1445, 4
    %v1453 = vsel %vm354, %v1450, %v1452
    %v1456 = vadd.f32 %v1439, %v1451
    %v1457 = vadd.f32 %v1440, %v1453
    %s1458 = sld [smem:[#allocation3 + $0x1b]]
    %v1459 = vstv %s1458
    %v1460 = vmul.f32 %v1205, %v1459
    %v1461 = vmul.f32 %v1206, %v1459
    %v1462 = vadd.f32 %v1456, %v1460
    %v1463 = vadd.f32 %v1457, %v1461
    %s1464 = sld [smem:[#allocation3 + $0x1f]]
    %v1465 = vstv %s1464
    %v1466 = vmul.f32 %v1205, %v1465
    %v1467 = vmul.f32 %v1206, %v1465
    %v1468 = vmul.f32 %v1207, %v1465
    %v1472 = vrot.slane %v1466, 1
    %v1473 = vrot.slane %v1467, 1
    %v1474 = vsel %vm132, %v1472, %v1473
    %v1475 = vrot.slane %v1468, 1
    %v1476 = vsel %vm132, %v1473, %v1475
    %1477 = vrot.lane.b32.xlu0 %v1474, 1
    %v1478 = vpop.permute.xlu0 %1477
    %1479 = vrot.lane.b32.xlu0 %v1476, 1
    %v1480 = vpop.permute.xlu0 %1479
    %v1483 = vadd.f32 %v1462, %v1478
    %v1484 = vadd.f32 %v1463, %v1480
    %s1485 = sld [smem:[#allocation3 + $0x20]]
    %v1486 = vstv %s1485
    %v1487 = vmul.f32 %v1205, %v1486
    %v1488 = vmul.f32 %v1206, %v1486
    %v1489 = vmul.f32 %v1207, %v1486
    %v1493 = vrot.slane %v1487, 1
    %v1494 = vrot.slane %v1488, 1
    %v1495 = vsel %vm132, %v1493, %v1494
    %v1496 = vrot.slane %v1489, 1
    %v1497 = vsel %vm132, %v1494, %v1496
    %v1500 = vadd.f32 %v1483, %v1495
    %v1501 = vadd.f32 %v1484, %v1497
    %s1502 = sld [smem:[#allocation3 + $0x21]]
    %v1503 = vstv %s1502
    %v1504 = vmul.f32 %v1205, %v1503
    %v1505 = vmul.f32 %v1206, %v1503
    %v1506 = vmul.f32 %v1207, %v1503
    %v1510 = vrot.slane %v1504, 1
    %v1511 = vrot.slane %v1505, 1
    %v1512 = vsel %vm132, %v1510, %v1511
    %v1513 = vrot.slane %v1506, 1
    %v1514 = vsel %vm132, %v1511, %v1513
    %1515 = vrot.lane.b32.xlu0 %v1512, 127
    %v1516 = vpop.permute.xlu0 %1515
    %1517 = vrot.lane.b32.xlu0 %v1514, 127
    %v1518 = vpop.permute.xlu0 %1517
    %v1521 = vadd.f32 %v1500, %v1516
    %v1522 = vadd.f32 %v1501, %v1518
    %s1523 = sld [smem:[#allocation3 + $0x23]]
    %v1524 = vstv %s1523
    %v1525 = vmul.f32 %v1205, %v1524
    %v1526 = vmul.f32 %v1206, %v1524
    %v1527 = vmul.f32 %v1207, %v1524
    %v1531 = vrot.slane %v1525, 2
    %v1532 = vrot.slane %v1526, 2
    %v1533 = vsel %vm192, %v1531, %v1532
    %v1534 = vrot.slane %v1527, 2
    %v1535 = vsel %vm192, %v1532, %v1534
    %1536 = vrot.lane.b32.xlu0 %v1533, 2
    %v1537 = vpop.permute.xlu0 %1536
    %1538 = vrot.lane.b32.xlu0 %v1535, 2
    %v1539 = vpop.permute.xlu0 %1538
    %v1542 = vadd.f32 %v1521, %v1537
    %v1543 = vadd.f32 %v1522, %v1539
    %s1544 = sld [smem:[#allocation3 + $0x24]]
    %v1545 = vstv %s1544
    %v1546 = vmul.f32 %v1205, %v1545
    %v1547 = vmul.f32 %v1206, %v1545
    %v1548 = vmul.f32 %v1207, %v1545
    %v1552 = vrot.slane %v1546, 2
    %v1553 = vrot.slane %v1547, 2
    %v1554 = vsel %vm192, %v1552, %v1553
    %v1555 = vrot.slane %v1548, 2
    %v1556 = vsel %vm192, %v1553, %v1555
    %1557 = vrot.lane.b32.xlu0 %v1554, 1
    %v1558 = vpop.permute.xlu0 %1557
    %1559 = vrot.lane.b32.xlu0 %v1556, 1
    %v1560 = vpop.permute.xlu0 %1559
    %v1563 = vadd.f32 %v1542, %v1558
    %v1564 = vadd.f32 %v1543, %v1560
    %s1565 = sld [smem:[#allocation3 + $0x25]]
    %v1566 = vstv %s1565
    %v1567 = vmul.f32 %v1205, %v1566
    %v1568 = vmul.f32 %v1206, %v1566
    %v1569 = vmul.f32 %v1207, %v1566
    %v1573 = vrot.slane %v1567, 2
    %v1574 = vrot.slane %v1568, 2
    %v1575 = vsel %vm192, %v1573, %v1574
    %v1576 = vrot.slane %v1569, 2
    %v1577 = vsel %vm192, %v1574, %v1576
    %v1580 = vadd.f32 %v1563, %v1575
    %v1581 = vadd.f32 %v1564, %v1577
    %s1582 = sld [smem:[#allocation3 + $0x26]]
    %v1583 = vstv %s1582
    %v1584 = vmul.f32 %v1205, %v1583
    %v1585 = vmul.f32 %v1206, %v1583
    %v1586 = vmul.f32 %v1207, %v1583
    %v1590 = vrot.slane %v1584, 2
    %v1591 = vrot.slane %v1585, 2
    %v1592 = vsel %vm192, %v1590, %v1591
    %v1593 = vrot.slane %v1586, 2
    %v1594 = vsel %vm192, %v1591, %v1593
    %1595 = vrot.lane.b32.xlu0 %v1592, 127
    %v1596 = vpop.permute.xlu0 %1595
    %1597 = vrot.lane.b32.xlu0 %v1594, 127
    %v1598 = vpop.permute.xlu0 %1597
    %v1601 = vadd.f32 %v1580, %v1596
    %v1602 = vadd.f32 %v1581, %v1598
    %s1603 = sld [smem:[#allocation3 + $0x27]]
    %v1604 = vstv %s1603
    %v1605 = vmul.f32 %v1205, %v1604
    %v1606 = vmul.f32 %v1206, %v1604
    %v1607 = vmul.f32 %v1207, %v1604
    %v1611 = vrot.slane %v1605, 2
    %v1612 = vrot.slane %v1606, 2
    %v1613 = vsel %vm192, %v1611, %v1612
    %v1614 = vrot.slane %v1607, 2
    %v1615 = vsel %vm192, %v1612, %v1614
    %1616 = vrot.lane.b32.xlu0 %v1613, 126
    %v1617 = vpop.permute.xlu0 %1616
    %1618 = vrot.lane.b32.xlu0 %v1615, 126
    %v1619 = vpop.permute.xlu0 %1618
    %v1622 = vadd.f32 %v1601, %v1617
    %v1623 = vadd.f32 %v1602, %v1619
    %s1624 = sld [smem:[#allocation3 + $0x29]]
    %v1625 = vstv %s1624
    %v1626 = vmul.f32 %v1205, %v1625
    %v1627 = vmul.f32 %v1206, %v1625
    %v1628 = vmul.f32 %v1207, %v1625
    %v1632 = vrot.slane %v1626, 3
    %v1633 = vrot.slane %v1627, 3
    %v1634 = vsel %vm294, %v1632, %v1633
    %v1635 = vrot.slane %v1628, 3
    %v1636 = vsel %vm294, %v1633, %v1635
    %1637 = vrot.lane.b32.xlu0 %v1634, 1
    %v1638 = vpop.permute.xlu0 %1637
    %1639 = vrot.lane.b32.xlu0 %v1636, 1
    %v1640 = vpop.permute.xlu0 %1639
    %v1643 = vadd.f32 %v1622, %v1638
    %v1644 = vadd.f32 %v1623, %v1640
    %s1645 = sld [smem:[#allocation3 + $0x2a]]
    %v1646 = vstv %s1645
    %v1647 = vmul.f32 %v1205, %v1646
    %v1648 = vmul.f32 %v1206, %v1646
    %v1649 = vmul.f32 %v1207, %v1646
    %v1653 = vrot.slane %v1647, 3
    %v1654 = vrot.slane %v1648, 3
    %v1655 = vsel %vm294, %v1653, %v1654
    %v1656 = vrot.slane %v1649, 3
    %v1657 = vsel %vm294, %v1654, %v1656
    %v1660 = vadd.f32 %v1643, %v1655
    %v1661 = vadd.f32 %v1644, %v1657
    %s1662 = sld [smem:[#allocation3 + $0x2b]]
    %v1663 = vstv %s1662
    %v1664 = vmul.f32 %v1205, %v1663
    %v1665 = vmul.f32 %v1206, %v1663
    %v1666 = vmul.f32 %v1207, %v1663
    %v1670 = vrot.slane %v1664, 3
    %v1671 = vrot.slane %v1665, 3
    %v1672 = vsel %vm294, %v1670, %v1671
    %v1673 = vrot.slane %v1666, 3
    %v1674 = vsel %vm294, %v1671, %v1673
    %1675 = vrot.lane.b32.xlu0 %v1672, 127
    %v1676 = vpop.permute.xlu0 %1675
    %1677 = vrot.lane.b32.xlu0 %v1674, 127
    %v1678 = vpop.permute.xlu0 %1677
    %v1681 = vadd.f32 %v1660, %v1676
    %v1682 = vadd.f32 %v1661, %v1678
    %s1683 = sld [smem:[#allocation3 + $0x2f]]
    %v1684 = vstv %s1683
    %v1685 = vmul.f32 %v1205, %v1684
    %v1686 = vmul.f32 %v1206, %v1684
    %v1687 = vmul.f32 %v1207, %v1684
    %v1691 = vrot.slane %v1685, 4
    %v1692 = vrot.slane %v1686, 4
    %v1693 = vsel %vm354, %v1691, %v1692
    %v1694 = vrot.slane %v1687, 4
    %v1695 = vsel %vm354, %v1692, %v1694
    %v1698 = vadd.f32 %v1681, %v1693
    %v1699 = vadd.f32 %v1682, %v1695
    %s1700 = sld [smem:[#allocation3 + $0x34]]
    %v1701 = vstv %s1700
    %v1702 = vmul.f32 %v1208, %v1701
    %v1703 = vmul.f32 %v1209, %v1701
    %v1704 = vadd.f32 %v1698, %v1702
    %v1705 = vadd.f32 %v1699, %v1703
    %s1706 = sld [smem:[#allocation3 + $0x38]]
    %v1707 = vstv %s1706
    %v1708 = vmul.f32 %v1208, %v1707
    %v1709 = vmul.f32 %v1209, %v1707
    %v1710 = vmul.f32 %v1210, %v1707
    %v1714 = vrot.slane %v1708, 1
    %v1715 = vrot.slane %v1709, 1
    %v1716 = vsel %vm132, %v1714, %v1715
    %v1717 = vrot.slane %v1710, 1
    %v1718 = vsel %vm132, %v1715, %v1717
    %1719 = vrot.lane.b32.xlu0 %v1716, 1
    %v1720 = vpop.permute.xlu0 %1719
    %1721 = vrot.lane.b32.xlu0 %v1718, 1
    %v1722 = vpop.permute.xlu0 %1721
    %v1725 = vadd.f32 %v1704, %v1720
    %v1726 = vadd.f32 %v1705, %v1722
    %s1727 = sld [smem:[#allocation3 + $0x39]]
    %v1728 = vstv %s1727
    %v1729 = vmul.f32 %v1208, %v1728
    %v1730 = vmul.f32 %v1209, %v1728
    %v1731 = vmul.f32 %v1210, %v1728
    %v1735 = vrot.slane %v1729, 1
    %v1736 = vrot.slane %v1730, 1
    %v1737 = vsel %vm132, %v1735, %v1736
    %v1738 = vrot.slane %v1731, 1
    %v1739 = vsel %vm132, %v1736, %v1738
    %v1742 = vadd.f32 %v1725, %v1737
    %v1743 = vadd.f32 %v1726, %v1739
    %s1744 = sld [smem:[#allocation3 + $0x3a]]
    %v1745 = vstv %s1744
    %v1746 = vmul.f32 %v1208, %v1745
    %v1747 = vmul.f32 %v1209, %v1745
    %v1748 = vmul.f32 %v1210, %v1745
    %v1752 = vrot.slane %v1746, 1
    %v1753 = vrot.slane %v1747, 1
    %v1754 = vsel %vm132, %v1752, %v1753
    %v1755 = vrot.slane %v1748, 1
    %v1756 = vsel %vm132, %v1753, %v1755
    %1757 = vrot.lane.b32.xlu0 %v1754, 127
    %v1758 = vpop.permute.xlu0 %1757
    %1759 = vrot.lane.b32.xlu0 %v1756, 127
    %v1760 = vpop.permute.xlu0 %1759
    %v1763 = vadd.f32 %v1742, %v1758
    %v1764 = vadd.f32 %v1743, %v1760
    %s1765 = sld [smem:[#allocation3 + $0x3c]]
    %v1766 = vstv %s1765
    %v1767 = vmul.f32 %v1208, %v1766
    %v1768 = vmul.f32 %v1209, %v1766
    %v1769 = vmul.f32 %v1210, %v1766
    %v1773 = vrot.slane %v1767, 2
    %v1774 = vrot.slane %v1768, 2
    %v1775 = vsel %vm192, %v1773, %v1774
    %v1776 = vrot.slane %v1769, 2
    %v1777 = vsel %vm192, %v1774, %v1776
    %1778 = vrot.lane.b32.xlu0 %v1775, 2
    %v1779 = vpop.permute.xlu0 %1778
    %1780 = vrot.lane.b32.xlu0 %v1777, 2
    %v1781 = vpop.permute.xlu0 %1780
    %v1784 = vadd.f32 %v1763, %v1779
    %v1785 = vadd.f32 %v1764, %v1781
    %s1786 = sld [smem:[#allocation3 + $0x3d]]
    %v1787 = vstv %s1786
    %v1788 = vmul.f32 %v1208, %v1787
    %v1789 = vmul.f32 %v1209, %v1787
    %v1790 = vmul.f32 %v1210, %v1787
    %v1794 = vrot.slane %v1788, 2
    %v1795 = vrot.slane %v1789, 2
    %v1796 = vsel %vm192, %v1794, %v1795
    %v1797 = vrot.slane %v1790, 2
    %v1798 = vsel %vm192, %v1795, %v1797
    %1799 = vrot.lane.b32.xlu0 %v1796, 1
    %v1800 = vpop.permute.xlu0 %1799
    %1801 = vrot.lane.b32.xlu0 %v1798, 1
    %v1802 = vpop.permute.xlu0 %1801
    %v1805 = vadd.f32 %v1784, %v1800
    %v1806 = vadd.f32 %v1785, %v1802
    %s1807 = sld [smem:[#allocation3 + $0x3e]]
    %v1808 = vstv %s1807
    %v1809 = vmul.f32 %v1208, %v1808
    %v1810 = vmul.f32 %v1209, %v1808
    %v1811 = vmul.f32 %v1210, %v1808
    %v1815 = vrot.slane %v1809, 2
    %v1816 = vrot.slane %v1810, 2
    %v1817 = vsel %vm192, %v1815, %v1816
    %v1818 = vrot.slane %v1811, 2
    %v1819 = vsel %vm192, %v1816, %v1818
    %v1822 = vadd.f32 %v1805, %v1817
    %v1823 = vadd.f32 %v1806, %v1819
    %s1824 = sld [smem:[#allocation3 + $0x3f]]
    %v1825 = vstv %s1824
    %v1826 = vmul.f32 %v1208, %v1825
    %v1827 = vmul.f32 %v1209, %v1825
    %v1828 = vmul.f32 %v1210, %v1825
    %v1832 = vrot.slane %v1826, 2
    %v1833 = vrot.slane %v1827, 2
    %v1834 = vsel %vm192, %v1832, %v1833
    %v1835 = vrot.slane %v1828, 2
    %v1836 = vsel %vm192, %v1833, %v1835
    %1837 = vrot.lane.b32.xlu0 %v1834, 127
    %v1838 = vpop.permute.xlu0 %1837
    %1839 = vrot.lane.b32.xlu0 %v1836, 127
    %v1840 = vpop.permute.xlu0 %1839
    %v1843 = vadd.f32 %v1822, %v1838
    %v1844 = vadd.f32 %v1823, %v1840
    %s1845 = sld [smem:[#allocation3 + $0x40]]
    %v1846 = vstv %s1845
    %v1847 = vmul.f32 %v1208, %v1846
    %v1848 = vmul.f32 %v1209, %v1846
    %v1849 = vmul.f32 %v1210, %v1846
    %v1853 = vrot.slane %v1847, 2
    %v1854 = vrot.slane %v1848, 2
    %v1855 = vsel %vm192, %v1853, %v1854
    %v1856 = vrot.slane %v1849, 2
    %v1857 = vsel %vm192, %v1854, %v1856
    %1858 = vrot.lane.b32.xlu0 %v1855, 126
    %v1859 = vpop.permute.xlu0 %1858
    %1860 = vrot.lane.b32.xlu0 %v1857, 126
    %v1861 = vpop.permute.xlu0 %1860
    %v1864 = vadd.f32 %v1843, %v1859
    %v1865 = vadd.f32 %v1844, %v1861
    %s1866 = sld [smem:[#allocation3 + $0x42]]
    %v1867 = vstv %s1866
    %v1868 = vmul.f32 %v1208, %v1867
    %v1869 = vmul.f32 %v1209, %v1867
    %v1870 = vmul.f32 %v1210, %v1867
    %v1874 = vrot.slane %v1868, 3
    %v1875 = vrot.slane %v1869, 3
    %v1876 = vsel %vm294, %v1874, %v1875
    %v1877 = vrot.slane %v1870, 3
    %v1878 = vsel %vm294, %v1875, %v1877
    %1879 = vrot.lane.b32.xlu0 %v1876, 1
    %v1880 = vpop.permute.xlu0 %1879
    %1881 = vrot.lane.b32.xlu0 %v1878, 1
    %v1882 = vpop.permute.xlu0 %1881
    %v1885 = vadd.f32 %v1864, %v1880
    %v1886 = vadd.f32 %v1865, %v1882
    %s1887 = sld [smem:[#allocation3 + $0x43]]
    %v1888 = vstv %s1887
    %v1889 = vmul.f32 %v1208, %v1888
    %v1890 = vmul.f32 %v1209, %v1888
    %v1891 = vmul.f32 %v1210, %v1888
    %v1895 = vrot.slane %v1889, 3
    %v1896 = vrot.slane %v1890, 3
    %v1897 = vsel %vm294, %v1895, %v1896
    %v1898 = vrot.slane %v1891, 3
    %v1899 = vsel %vm294, %v1896, %v1898
    %v1902 = vadd.f32 %v1885, %v1897
    %v1903 = vadd.f32 %v1886, %v1899
    %s1904 = sld [smem:[#allocation3 + $0x44]]
    %v1905 = vstv %s1904
    %v1906 = vmul.f32 %v1208, %v1905
    %v1907 = vmul.f32 %v1209, %v1905
    %v1908 = vmul.f32 %v1210, %v1905
    %v1912 = vrot.slane %v1906, 3
    %v1913 = vrot.slane %v1907, 3
    %v1914 = vsel %vm294, %v1912, %v1913
    %v1915 = vrot.slane %v1908, 3
    %v1916 = vsel %vm294, %v1913, %v1915
    %1917 = vrot.lane.b32.xlu0 %v1914, 127
    %v1918 = vpop.permute.xlu0 %1917
    %1919 = vrot.lane.b32.xlu0 %v1916, 127
    %v1920 = vpop.permute.xlu0 %1919
    %v1923 = vadd.f32 %v1902, %v1918
    %v1924 = vadd.f32 %v1903, %v1920
    %s1925 = sld [smem:[#allocation3 + $0x48]]
    %v1926 = vstv %s1925
    %v1927 = vmul.f32 %v1208, %v1926
    %v1928 = vmul.f32 %v1209, %v1926
    %v1929 = vmul.f32 %v1210, %v1926
    %v1933 = vrot.slane %v1927, 4
    %v1934 = vrot.slane %v1928, 4
    %v1935 = vsel %vm354, %v1933, %v1934
    %v1936 = vrot.slane %v1929, 4
    %v1937 = vsel %vm354, %v1934, %v1936
    %v1940 = vadd.f32 %v1923, %v1935
    %v1941 = vadd.f32 %v1924, %v1937
    %s1942 = sld [smem:[#allocation3 + $0x4d]]
    %v1943 = vstv %s1942
    %v1944 = vmul.f32 %v1211, %v1943
    %v1945 = vmul.f32 %v1212, %v1943
    %v1946 = vadd.f32 %v1940, %v1944
    %v1947 = vadd.f32 %v1941, %v1945
    %s1948 = sld [smem:[#allocation3 + $0x51]]
    %v1949 = vstv %s1948
    %v1950 = vmul.f32 %v1211, %v1949
    %v1951 = vmul.f32 %v1212, %v1949
    %v1952 = vmul.f32 %v1213, %v1949
    %v1956 = vrot.slane %v1950, 1
    %v1957 = vrot.slane %v1951, 1
    %v1958 = vsel %vm132, %v1956, %v1957
    %v1959 = vrot.slane %v1952, 1
    %v1960 = vsel %vm132, %v1957, %v1959
    %1961 = vrot.lane.b32.xlu0 %v1958, 1
    %v1962 = vpop.permute.xlu0 %1961
    %1963 = vrot.lane.b32.xlu0 %v1960, 1
    %v1964 = vpop.permute.xlu0 %1963
    %v1967 = vadd.f32 %v1946, %v1962
    %v1968 = vadd.f32 %v1947, %v1964
    %s1969 = sld [smem:[#allocation3 + $0x52]]
    %v1970 = vstv %s1969
    %v1971 = vmul.f32 %v1211, %v1970
    %v1972 = vmul.f32 %v1212, %v1970
    %v1973 = vmul.f32 %v1213, %v1970
    %v1977 = vrot.slane %v1971, 1
    %v1978 = vrot.slane %v1972, 1
    %v1979 = vsel %vm132, %v1977, %v1978
    %v1980 = vrot.slane %v1973, 1
    %v1981 = vsel %vm132, %v1978, %v1980
    %v1984 = vadd.f32 %v1967, %v1979
    %v1985 = vadd.f32 %v1968, %v1981
    %s1986 = sld [smem:[#allocation3 + $0x53]]
    %v1987 = vstv %s1986
    %v1988 = vmul.f32 %v1211, %v1987
    %v1989 = vmul.f32 %v1212, %v1987
    %v1990 = vmul.f32 %v1213, %v1987
    %v1994 = vrot.slane %v1988, 1
    %v1995 = vrot.slane %v1989, 1
    %v1996 = vsel %vm132, %v1994, %v1995
    %v1997 = vrot.slane %v1990, 1
    %v1998 = vsel %vm132, %v1995, %v1997
    %1999 = vrot.lane.b32.xlu0 %v1996, 127
    %v2000 = vpop.permute.xlu0 %1999
    %2001 = vrot.lane.b32.xlu0 %v1998, 127
    %v2002 = vpop.permute.xlu0 %2001
    %v2005 = vadd.f32 %v1984, %v2000
    %v2006 = vadd.f32 %v1985, %v2002
    %s2007 = sld [smem:[#allocation3 + $0x55]]
    %v2008 = vstv %s2007
    %v2009 = vmul.f32 %v1211, %v2008
    %v2010 = vmul.f32 %v1212, %v2008
    %v2011 = vmul.f32 %v1213, %v2008
    %v2015 = vrot.slane %v2009, 2
    %v2016 = vrot.slane %v2010, 2
    %v2017 = vsel %vm192, %v2015, %v2016
    %v2018 = vrot.slane %v2011, 2
    %v2019 = vsel %vm192, %v2016, %v2018
    %2020 = vrot.lane.b32.xlu0 %v2017, 2
    %v2021 = vpop.permute.xlu0 %2020
    %2022 = vrot.lane.b32.xlu0 %v2019, 2
    %v2023 = vpop.permute.xlu0 %2022
    %v2026 = vadd.f32 %v2005, %v2021
    %v2027 = vadd.f32 %v2006, %v2023
    %s2028 = sld [smem:[#allocation3 + $0x56]]
    %v2029 = vstv %s2028
    %v2030 = vmul.f32 %v1211, %v2029
    %v2031 = vmul.f32 %v1212, %v2029
    %v2032 = vmul.f32 %v1213, %v2029
    %v2036 = vrot.slane %v2030, 2
    %v2037 = vrot.slane %v2031, 2
    %v2038 = vsel %vm192, %v2036, %v2037
    %v2039 = vrot.slane %v2032, 2
    %v2040 = vsel %vm192, %v2037, %v2039
    %2041 = vrot.lane.b32.xlu0 %v2038, 1
    %v2042 = vpop.permute.xlu0 %2041
    %2043 = vrot.lane.b32.xlu0 %v2040, 1
    %v2044 = vpop.permute.xlu0 %2043
    %v2047 = vadd.f32 %v2026, %v2042
    %v2048 = vadd.f32 %v2027, %v2044
    %s2049 = sld [smem:[#allocation3 + $0x57]]
    %v2050 = vstv %s2049
    %v2051 = vmul.f32 %v1211, %v2050
    %v2052 = vmul.f32 %v1212, %v2050
    %v2053 = vmul.f32 %v1213, %v2050
    %v2057 = vrot.slane %v2051, 2
    %v2058 = vrot.slane %v2052, 2
    %v2059 = vsel %vm192, %v2057, %v2058
    %v2060 = vrot.slane %v2053, 2
    %v2061 = vsel %vm192, %v2058, %v2060
    %v2064 = vadd.f32 %v2047, %v2059
    %v2065 = vadd.f32 %v2048, %v2061
    %s2066 = sld [smem:[#allocation3 + $0x58]]
    %v2067 = vstv %s2066
    %v2068 = vmul.f32 %v1211, %v2067
    %v2069 = vmul.f32 %v1212, %v2067
    %v2070 = vmul.f32 %v1213, %v2067
    %v2074 = vrot.slane %v2068, 2
    %v2075 = vrot.slane %v2069, 2
    %v2076 = vsel %vm192, %v2074, %v2075
    %v2077 = vrot.slane %v2070, 2
    %v2078 = vsel %vm192, %v2075, %v2077
    %2079 = vrot.lane.b32.xlu0 %v2076, 127
    %v2080 = vpop.permute.xlu0 %2079
    %2081 = vrot.lane.b32.xlu0 %v2078, 127
    %v2082 = vpop.permute.xlu0 %2081
    %v2085 = vadd.f32 %v2064, %v2080
    %v2086 = vadd.f32 %v2065, %v2082
    %s2087 = sld [smem:[#allocation3 + $0x59]]
    %v2088 = vstv %s2087
    %v2089 = vmul.f32 %v1211, %v2088
    %v2090 = vmul.f32 %v1212, %v2088
    %v2091 = vmul.f32 %v1213, %v2088
    %v2095 = vrot.slane %v2089, 2
    %v2096 = vrot.slane %v2090, 2
    %v2097 = vsel %vm192, %v2095, %v2096
    %v2098 = vrot.slane %v2091, 2
    %v2099 = vsel %vm192, %v2096, %v2098
    %2100 = vrot.lane.b32.xlu0 %v2097, 126
    %v2101 = vpop.permute.xlu0 %2100
    %2102 = vrot.lane.b32.xlu0 %v2099, 126
    %v2103 = vpop.permute.xlu0 %2102
    %v2106 = vadd.f32 %v2085, %v2101
    %v2107 = vadd.f32 %v2086, %v2103
    %s2108 = sld [smem:[#allocation3 + $0x5b]]
    %v2109 = vstv %s2108
    %v2110 = vmul.f32 %v1211, %v2109
    %v2111 = vmul.f32 %v1212, %v2109
    %v2112 = vmul.f32 %v1213, %v2109
    %v2116 = vrot.slane %v2110, 3
    %v2117 = vrot.slane %v2111, 3
    %v2118 = vsel %vm294, %v2116, %v2117
    %v2119 = vrot.slane %v2112, 3
    %v2120 = vsel %vm294, %v2117, %v2119
    %2121 = vrot.lane.b32.xlu0 %v2118, 1
    %v2122 = vpop.permute.xlu0 %2121
    %2123 = vrot.lane.b32.xlu0 %v2120, 1
    %v2124 = vpop.permute.xlu0 %2123
    %v2127 = vadd.f32 %v2106, %v2122
    %v2128 = vadd.f32 %v2107, %v2124
    %s2129 = sld [smem:[#allocation3 + $0x5c]]
    %v2130 = vstv %s2129
    %v2131 = vmul.f32 %v1211, %v2130
    %v2132 = vmul.f32 %v1212, %v2130
    %v2133 = vmul.f32 %v1213, %v2130
    %v2137 = vrot.slane %v2131, 3
    %v2138 = vrot.slane %v2132, 3
    %v2139 = vsel %vm294, %v2137, %v2138
    %v2140 = vrot.slane %v2133, 3
    %v2141 = vsel %vm294, %v2138, %v2140
    %v2144 = vadd.f32 %v2127, %v2139
    %v2145 = vadd.f32 %v2128, %v2141
    %s2146 = sld [smem:[#allocation3 + $0x5d]]
    %v2147 = vstv %s2146
    %v2148 = vmul.f32 %v1211, %v2147
    %v2149 = vmul.f32 %v1212, %v2147
    %v2150 = vmul.f32 %v1213, %v2147
    %v2154 = vrot.slane %v2148, 3
    %v2155 = vrot.slane %v2149, 3
    %v2156 = vsel %vm294, %v2154, %v2155
    %v2157 = vrot.slane %v2150, 3
    %v2158 = vsel %vm294, %v2155, %v2157
    %2159 = vrot.lane.b32.xlu0 %v2156, 127
    %v2160 = vpop.permute.xlu0 %2159
    %2161 = vrot.lane.b32.xlu0 %v2158, 127
    %v2162 = vpop.permute.xlu0 %2161
    %v2165 = vadd.f32 %v2144, %v2160
    %v2166 = vadd.f32 %v2145, %v2162
    %s2167 = sld [smem:[#allocation3 + $0x61]]
    %v2168 = vstv %s2167
    %v2169 = vmul.f32 %v1211, %v2168
    %v2170 = vmul.f32 %v1212, %v2168
    %v2171 = vmul.f32 %v1213, %v2168
    %v2175 = vrot.slane %v2169, 4
    %v2176 = vrot.slane %v2170, 4
    %v2177 = vsel %vm354, %v2175, %v2176
    %v2178 = vrot.slane %v2171, 4
    %v2179 = vsel %vm354, %v2176, %v2178
    %v2182 = vadd.f32 %v2165, %v2177
    %v2183 = vadd.f32 %v2166, %v2179
    %v2184 = vsub.f32 0.0, %v2182
    %v2185 = vsub.f32 0.0, %v2183
    %v2186 = vmul.f32 %v2184, 1.442695
    %v2187 = vpow.pop %v2186
    %v2188 = vmul.f32 %v2185, 1.442695
    %v2189 = vpow.pop %v2188
    %v2190 = vadd.f32 %v2187, 1.0
    %v2191 = vadd.f32 %v2189, 1.0
    %v2192 = vrcp.pop %v2190
    %v2193 = vmul.f32 %v2190, %v2192
    %v2194 = vsub.f32 1.0, %v2193
    %v2195 = vmul.f32 %v2192, %v2194
    %v2196 = vadd.f32 %v2192, %v2195
    %vm2197 = vweird.f32 %v2190
    %vm2198 = vweird.f32 %v2192
    %vm2199 = vmor %vm2197, %vm2198
    %v2200 = vsel %vm2199, %v2192, %v2196
    %v2201 = vand.u32 2147483647, %v2190
    %vm2202 = vcmp.eq.f32.partialorder %v2201, 8.507059e+37
    %v2203 = vand.u32 %v2190, 2147483648
    %v2204 = vor.u32 1.1754944e-38, %v2203
    %v2205 = vsel %vm2202, %v2204, %v2200
    %v2206 = vmul.f32 1.0, %v2205
    %v2207 = vrcp.pop %v2191
    %v2208 = vmul.f32 %v2191, %v2207
    %v2209 = vsub.f32 1.0, %v2208
    %v2210 = vmul.f32 %v2207, %v2209
    %v2211 = vadd.f32 %v2207, %v2210
    %vm2212 = vweird.f32 %v2191
    %vm2213 = vweird.f32 %v2207
    %vm2214 = vmor %vm2212, %vm2213
    %v2215 = vsel %vm2214, %v2207, %v2211
    %v2216 = vand.u32 2147483647, %v2191
    %vm2217 = vcmp.eq.f32.partialorder %v2216, 8.507059e+37
    %v2218 = vand.u32 %v2191, 2147483648
    %v2219 = vor.u32 1.1754944e-38, %v2218
    %v2220 = vsel %vm2217, %v2219, %v2215
    %v2221 = vmul.f32 1.0, %v2220
    %2224 = vrot.lane.b32.xlu0 %v2206, 126
    %v2225 = vpop.permute.xlu0 %2224
    %2226 = vrot.lane.b32.xlu0 %v2221, 126
    %v2227 = vpop.permute.xlu0 %2226
    %v2230 = vmul.f32 %v1154, %v2225
    %v2231 = vmul.f32 %v1155, %v2227
    %v2232 = vmul.f32 %v1156, %v2225
    %v2233 = vmul.f32 %v1157, %v2227
    %v2234 = vmul.f32 %v1158, %v2225
    %v2235 = vmul.f32 %v1159, %v2227
    %v2236 = vmul.f32 %v1160, %v2225
    %v2237 = vmul.f32 %v1161, %v2227
    %s2238 = scalar_lea.vmem [#allocation8], 64
    %2239 = vst.msk [vmem:[%s2238] sm:$0xff] %vm1144, %v2230
    %2240 = vst.msk [vmem:[%s2238 + $0x8] sm:$0xff] %vm1144, %v2231
    %2241 = vst.msk [vmem:[%s2238 + $0x10] sm:$0xff] %vm1144, %v2232
    %2242 = vst.msk [vmem:[%s2238 + $0x18] sm:$0xff] %vm1144, %v2233
    %2243 = vst.msk [vmem:[%s2238 + $0x20] sm:$0xff] %vm1144, %v2234
    %2244 = vst.msk [vmem:[%s2238 + $0x28] sm:$0xff] %vm1144, %v2235
    %2245 = vst.msk [vmem:[%s2238 + $0x30] sm:$0xff] %vm1144, %v2236
    %2246 = vst.msk [vmem:[%s2238 + $0x38] sm:$0xff] %vm1144, %v2237
    // Predicated region
    $region18: #{tpu_custom_call.1} parent=1 // pred_check
      _
    $region19: #{tpu_custom_call.1} parent=1 // pred_check_branch
      %2248 = sbr.rel (0) target = $region21
    $region20: #{tpu_custom_call.1} parent=1 // pred_region
      %2250 = vsyncadd [#allocation5], 0
      %s2251 = sshll.u32 [#allocation8], 4
      %s2252 = int_to_ptr.vmem [resolvable:$true] %s2251
      %s2253 = sshll.u32 %s2, 4
      %s2254 = int_to_ptr.hbm [resolvable:$true] %s2253
      %2259 = dma.vmem_to_hbm [thread:$0]  %s2252, 2048, %s2254, [#allocation5], 128, 128, 8
    $region21: #{tpu_custom_call.1} parent=1 // pred_fallthru
      _
    // Predicated region
    $region22: #{tpu_custom_call.1} parent=1 // pred_check
      _
    $region23: #{tpu_custom_call.1} parent=1 // pred_check_branch
      %2261 = sbr.rel (0) target = $region25
    $region24: #{tpu_custom_call.1} parent=1 // pred_region
      %2263 = dma.done [#allocation5], 2048
    $region25: #{tpu_custom_call.1} parent=1 // pred_fallthru
      _
    %2264 = vsyncpa [#allocation4], 1
    %2265 = vsyncpa [#allocation5], 1
    %2266 = vsyncpa [#allocation6], 1

</llo_original>
